<compile_context>
chip_gen: v7x
topology: tpu7x:2x2x1
jax: 0.10.0
libtpu: 0.0.40
codegen_flags: <defaults>
</compile_context>

<pallas_src>
import jax
import jax.numpy as jnp
from jax import lax
from jax.experimental import pallas as pl
from jax.experimental.pallas import tpu as pltpu


# ----------------------------- parameter preprocessing (hoisted, one-time) ---------------


def _bn_fold(bn, eps):
    gamma, beta, mean, var = bn
    scale = gamma / jnp.sqrt(var + eps)
    return scale, beta - mean * scale          # y = scale * x + (beta - mean*scale)


def prepare_msc_params(params, *, C_in, kernel_size=3, dilations=(1, 2, 3, 4), stride=1,
                       residual=True, residual_kernel_size=1, eps=1e-5):
    """Fold BatchNorm into the conv weights and stack the stems. Call once per model."""
    branches, pool, point = params["branches"], params["pool"], params["point"]
    n_dil = len(branches)
    Cb = branches[0]["w1"].shape[0]
    C_out = (n_dil + 2) * Cb
    ksizes = list(kernel_size) if isinstance(kernel_size, (list, tuple)) \
        else [kernel_size] * n_dil

    if not residual:
        residual_mode = "none"
    elif C_in == C_out and stride == 1:
        residual_mode = "identity"
    else:
        residual_mode = "conv"
        assert residual_kernel_size == 1, \
            "TODO(synk): residual_kernel_size > 1 not implemented"

    # Stacked stem matmul rows: 4 dilated stems (ReLU), pool stem (ReLU), point stem
    # (no ReLU), then optionally the residual 1x1 conv rows (no ReLU).
    w_rows, shift_rows = [], []

    def add_stem(w1, b1, bn):
        s, base = _bn_fold(bn, eps)
        w_rows.append(s[:, None] * w1[:, :, 0, 0])
        shift_rows.append(base + s * b1)

    for br in branches:
        add_stem(br["w1"], br["b1"], br["bn1"])
    add_stem(pool["w1"], pool["b1"], pool["bn1"])
    add_stem(point["w1"], point["b1"], point["bn1"])
    if residual_mode == "conv":
        rb = params["residual"]
        add_stem(rb["w1"], rb["b1"], rb["bn1"])

    w_stem = jnp.concatenate(w_rows, axis=0).astype(jnp.float32)          # (R_stem, C_in)
    shift_stem = jnp.concatenate(shift_rows)[:, None].astype(jnp.float32)  # (R_stem, 1)

    # Per-branch second (temporal) conv, BN2 folded in; contraction order (k, c).
    w2_list, shift2_list = [], []
    for br, K in zip(branches, ksizes):
        w2 = jnp.transpose(br["w2"][:, :, :, 0], (0, 2, 1)).reshape(Cb, K * Cb)
        s, base = _bn_fold(br["bn2"], eps)
        w2_list.append((s[:, None] * w2).astype(jnp.float32))
        shift2_list.append((base + s * br["b2"])[:, None].astype(jnp.float32))

    ps, pbase = _bn_fold(pool["bn2"], eps)

    return {
        "w_stem": w_stem, "shift_stem": shift_stem,
        "w2": w2_list, "shift2": shift2_list,
        "pool_scale": ps[:, None].astype(jnp.float32),
        "pool_shift": pbase[:, None].astype(jnp.float32),
        "config": dict(C_in=C_in, Cb=Cb, n_dil=n_dil, ksizes=ksizes,
                       dilations=list(dilations), stride=stride,
                       residual_mode=residual_mode),
    }


# ----------------------------- fused Pallas kernel ---------------------------------------


def _make_msc_kernel(*, C_in, Cb, n_dil, ksizes, dilations, P, T, V, residual_mode):
    L = T * V          # lane axis per sample, (t, v)-flattened
    PV = P * V         # zero-pad (in lanes) on each side of the time axis
    n_relu = (n_dil + 1) * Cb          # ReLU rows: dilated stems + pool stem (contiguous)

    def kernel(x_ref, w_stem_ref, shift_stem_ref, *rest):
        w2_refs = rest[:n_dil]
        shift2_refs = rest[n_dil:2 * n_dil]
        pool_scale_ref = rest[2 * n_dil]
        pool_shift_ref = rest[2 * n_dil + 1]
        out_ref = rest[2 * n_dil + 2]

        xb = x_ref[0]                                                    # (C_in, L)

        # ---- all stems (+ optional residual conv rows) as one stacked MXU matmul ----
        stem = jnp.dot(w_stem_ref[...], xb,
                       preferred_element_type=jnp.float32) + shift_stem_ref[...]
        stem_relu = jnp.maximum(stem[:n_relu], 0.0)                      # static row split

        # ---- zero-pad the time axis in VMEM (shared by all temporal branches) ----
        zpad = jnp.zeros((n_relu, PV), jnp.float32)
        spad = jnp.concatenate([zpad, stem_relu, zpad], axis=1)          # (n_relu, L+2PV)

        outs = []
        # ---- dilated temporal-conv branches: in-kernel taps + dense per-branch matmul ----
        for i in range(n_dil):
            K, d = ksizes[i], dilations[i]
            pad_i = (K + (K - 1) * (d - 1) - 1) // 2
            rows = spad[i * Cb:(i + 1) * Cb]                             # (Cb, L+2PV)
            taps = [rows[:, (P - pad_i + k * d) * V:(P - pad_i + k * d) * V + L]
                    for k in range(K)]
            col = jnp.concatenate(taps, axis=0)                          # (K*Cb, L)
            y = jnp.dot(w2_refs[i][...], col, preferred_element_type=jnp.float32)
            outs.append(y + shift2_refs[i][...])

        # ---- max-pool branch: MaxPool2d((3,1), pad=(1,0)) + BN.  Zero padding is
        #      equivalent to -inf here because the pool stem output is post-ReLU (>= 0). ----
        prow = spad[n_dil * Cb:(n_dil + 1) * Cb]
        m = prow[:, (P - 1) * V:(P - 1) * V + L]
        for k in (1, 2):
            m = jnp.maximum(m, prow[:, (P - 1 + k) * V:(P - 1 + k) * V + L])
        outs.append(m * pool_scale_ref[...] + pool_shift_ref[...])

        # ---- 1x1 (point) branch: conv + BN already computed in the stem (no ReLU) ----
        outs.append(stem[(n_dil + 1) * Cb:(n_dil + 2) * Cb])

        out = jnp.concatenate(outs, axis=0)                              # (C_out, L)

        # ---- residual, fused in the epilogue ----
        if residual_mode == "identity":
            out = out + xb
        elif residual_mode == "conv":
            out = out + stem[(n_dil + 2) * Cb:]                          # residual rows

        out_ref[0] = out

    return kernel


# ----------------------------- forward ----------------------------------------------------


def multiscale_temporal_conv(x, prep):
    """x: (N, C_in, T, V) float32 -> (N, C_out, T_out, V) float32."""
    N, C_in, T, V = x.shape
    cfg = prep["config"]
    Cb, n_dil = cfg["Cb"], cfg["n_dil"]
    ksizes, dilations, stride = cfg["ksizes"], cfg["dilations"], cfg["stride"]
    residual_mode = cfg["residual_mode"]
    C_out = (n_dil + 2) * Cb
    assert C_in == cfg["C_in"], (C_in, cfg["C_in"])

    pads = []
    for K, d in zip(ksizes, dilations):
        assert (d * (K - 1)) % 2 == 0, "branches must produce matching temporal length"
        pads.append((K + (K - 1) * (d - 1) - 1) // 2)
    P = max(pads + [1])                      # shared zero-pad covers every branch + pool
    L = T * V

    kernel = _make_msc_kernel(C_in=C_in, Cb=Cb, n_dil=n_dil, ksizes=ksizes,
                              dilations=dilations, P=P, T=T, V=V,
                              residual_mode=residual_mode)

    x_flat = x.reshape(N, C_in, L).astype(jnp.float32)     # free reshape, no transpose
    R_stem = prep["w_stem"].shape[0]

    def full2d(r, c):
        return pl.BlockSpec((r, c), lambda n: (0, 0))       # resident across the grid

    in_specs = [pl.BlockSpec((1, C_in, L), lambda n: (n, 0, 0)),
                full2d(R_stem, C_in),
                full2d(R_stem, 1)]
    args = [x_flat, prep["w_stem"], prep["shift_stem"]]
    for w2 in prep["w2"]:
        in_specs.append(full2d(w2.shape[0], w2.shape[1]))
        args.append(w2)
    for s2 in prep["shift2"]:
        in_specs.append(full2d(Cb, 1))
        args.append(s2)
    in_specs += [full2d(Cb, 1), full2d(Cb, 1)]
    args += [prep["pool_scale"], prep["pool_shift"]]

    flops = N * (2 * R_stem * C_in * L
                 + sum(2 * Cb * w2.shape[1] * L for w2 in prep["w2"]))
    bytes_accessed = 4 * (x_flat.size + N * C_out * L + sum(int(a.size) for a in args[1:]))
    cost = pl.CostEstimate(flops=int(flops), transcendentals=0,
                           bytes_accessed=int(bytes_accessed))

    out = pl.pallas_call(
        kernel,
        out_shape=jax.ShapeDtypeStruct((N, C_out, L), jnp.float32),
        grid_spec=pltpu.PrefetchScalarGridSpec(
            num_scalar_prefetch=0,
            grid=(N,),
            in_specs=in_specs,
            out_specs=pl.BlockSpec((1, C_out, L), lambda n: (n, 0, 0)),
        ),
        compiler_params=pltpu.CompilerParams(dimension_semantics=("parallel",)),
        cost_estimate=cost,
    )(*args)

    out = out.reshape(N, C_out, T, V)
    if stride > 1:
        out = out[:, :, ::stride, :]                       # stride-s result = stride-1[t*s]
    return out


# ----------------------------- pure-JAX reference -----------------------------------------


def _conv2d(x, w, b, *, stride=(1, 1), padding=((0, 0), (0, 0)), dilation=(1, 1)):
    y = lax.conv_general_dilated(x, w, window_strides=stride, padding=padding,
                                 rhs_dilation=dilation,
                                 dimension_numbers=("NCHW", "OIHW", "NCHW"))
    return y + b.reshape(1, -1, 1, 1)


def _bn_ref(x, bn, eps):
    gamma, beta, mean, var = bn
    return ((x - mean.reshape(1, -1, 1, 1)) / jnp.sqrt(var.reshape(1, -1, 1, 1) + eps)
            * gamma.reshape(1, -1, 1, 1) + beta.reshape(1, -1, 1, 1))


def multiscale_temporal_conv_ref(x, params, *, kernel_size=3, dilations=(1, 2, 3, 4),
                                 stride=1, residual=True, residual_kernel_size=1,
                                 eps=1e-5):
    branches, pool, point = params["branches"], params["pool"], params["point"]
    n_dil = len(branches)
    ksizes = list(kernel_size) if isinstance(kernel_size, (list, tuple)) \
        else [kernel_size] * n_dil
    outs = []
    for br, K, d in zip(branches, ksizes, dilations):
        y = jax.nn.relu(_bn_ref(_conv2d(x, br["w1"], br["b1"]), br["bn1"], eps))
        pad = (K + (K - 1) * (d - 1) - 1) // 2
        y = _conv2d(y, br["w2"], br["b2"], stride=(stride, 1),
                    padding=((pad, pad), (0, 0)), dilation=(d, 1))
        outs.append(_bn_ref(y, br["bn2"], eps))
    y = jax.nn.relu(_bn_ref(_conv2d(x, pool["w1"], pool["b1"]), pool["bn1"], eps))
    y = lax.reduce_window(y, -jnp.inf, lax.max, window_dimensions=(1, 1, 3, 1),
                          window_strides=(1, 1, stride, 1),
                          padding=((0, 0), (0, 0), (1, 1), (0, 0)))
    outs.append(_bn_ref(y, pool["bn2"], eps))
    y = _conv2d(x, point["w1"], point["b1"], stride=(stride, 1))
    outs.append(_bn_ref(y, point["bn1"], eps))
    out = jnp.concatenate(outs, axis=1)
    if not residual:
        res = 0.0
    elif x.shape[1] == out.shape[1] and stride == 1:
        res = x
    else:
        rb = params["residual"]
        rk = residual_kernel_size
        pad_r = (rk - 1) // 2
        y = _conv2d(x, rb["w1"], rb["b1"], stride=(stride, 1),
                    padding=((pad_r, pad_r), (0, 0)))
        res = _bn_ref(y, rb["bn1"], eps)
    return out + res


# ----------------------------- test --------------------------------------------------------


def _make_params(keys, C_in, Cb, K, dilations, with_residual, C_out):
    def normal(shape, scale=1.0):
        return scale * jax.random.normal(next(keys), shape, dtype=jnp.float32)

    def make_bn(c):
        return (1.0 + 0.1 * normal((c,)), 0.1 * normal((c,)),
                0.1 * normal((c,)), jnp.abs(normal((c,))) + 0.5)

    branches = []
    for _ in dilations:
        branches.append({"w1": normal((Cb, C_in, 1, 1), 0.1), "b1": normal((Cb,), 0.1),
                         "bn1": make_bn(Cb),
                         "w2": normal((Cb, Cb, K, 1), 0.1), "b2": normal((Cb,), 0.1),
                         "bn2": make_bn(Cb)})
    pool = {"w1": normal((Cb, C_in, 1, 1), 0.1), "b1": normal((Cb,), 0.1),
            "bn1": make_bn(Cb), "bn2": make_bn(Cb)}
    point = {"w1": normal((Cb, C_in, 1, 1), 0.1), "b1": normal((Cb,), 0.1),
             "bn1": make_bn(Cb)}
    params = {"branches": branches, "pool": pool, "point": point}
    if with_residual:
        params["residual"] = {"w1": normal((C_out, C_in, 1, 1), 0.1),
                              "b1": normal((C_out,), 0.1), "bn1": make_bn(C_out)}
    return params


if __name__ == "__main__":
    key = jax.random.PRNGKey(0)
    keys = iter(jax.random.split(key, 512))      # plenty of keys (previous bug: ran out)

    def normal(shape, scale=1.0):
        return scale * jax.random.normal(next(keys), shape, dtype=jnp.float32)

    dilations = (1, 2, 3, 4)
    K = 3
    C_out = 24
    Cb = C_out // (len(dilations) + 2)

    # --- test 1: identity residual (C_in == C_out, stride 1) ---
    N, C_in, T, V = 2, 24, 16, 16
    stride = 1
    params = _make_params(keys, C_in, Cb, K, dilations, with_residual=False, C_out=C_out)
    x = normal((N, C_in, T, V))
    prep = prepare_msc_params(params, C_in=C_in, kernel_size=K, dilations=dilations,
                              stride=stride)
    out = jax.block_until_ready(multiscale_temporal_conv(x, prep))
    ref = multiscale_temporal_conv_ref(x, params, kernel_size=K, dilations=dilations,
                                       stride=stride)
    assert out.shape == ref.shape == (N, C_out, T, V), (out.shape, ref.shape)
    # Tolerance allows for TPU default matmul/conv precision differences between the
    # fused Pallas matmuls (f32 accumulation) and the XLA reference convolutions.
    assert jnp.allclose(out, ref, atol=2e-2, rtol=2e-2), \
        float(jnp.max(jnp.abs(out - ref)))

    # --- test 2: conv residual (C_in != C_out) with stride 2 ---
    C_in2, stride2 = 16, 2
    params2 = _make_params(keys, C_in2, Cb, K, dilations, with_residual=True, C_out=C_out)
    x2 = normal((N, C_in2, T, V))
    prep2 = prepare_msc_params(params2, C_in=C_in2, kernel_size=K, dilations=dilations,
                               stride=stride2)
    out2 = jax.block_until_ready(multiscale_temporal_conv(x2, prep2))
    ref2 = multiscale_temporal_conv_ref(x2, params2, kernel_size=K, dilations=dilations,
                                        stride=stride2)
    T_out2 = (T - 1) // stride2 + 1
    assert out2.shape == ref2.shape == (N, C_out, T_out2, V), (out2.shape, ref2.shape)
    assert jnp.allclose(out2, ref2, atol=2e-2, rtol=2e-2), \
        float(jnp.max(jnp.abs(out2 - ref2)))

    print("KERNEL_OK")
</pallas_src>

<mosaic_0001>
module attributes {stable_mosaic.version = 11 : i64} {
  func.func @kernel(%arg0: i32, %arg1: memref<1x24x256xf32, #tpu.memory_space<vmem>>, %arg2: memref<24x24xf32, #tpu.memory_space<vmem>>, %arg3: memref<24x1xf32, #tpu.memory_space<vmem>>, %arg4: memref<4x12xf32, #tpu.memory_space<vmem>>, %arg5: memref<4x12xf32, #tpu.memory_space<vmem>>, %arg6: memref<4x12xf32, #tpu.memory_space<vmem>>, %arg7: memref<4x12xf32, #tpu.memory_space<vmem>>, %arg8: memref<4x1xf32, #tpu.memory_space<vmem>>, %arg9: memref<4x1xf32, #tpu.memory_space<vmem>>, %arg10: memref<4x1xf32, #tpu.memory_space<vmem>>, %arg11: memref<4x1xf32, #tpu.memory_space<vmem>>, %arg12: memref<4x1xf32, #tpu.memory_space<vmem>>, %arg13: memref<4x1xf32, #tpu.memory_space<vmem>>, %arg14: memref<1x24x256xf32, #tpu.memory_space<vmem>>) attributes {dimension_semantics = [#tpu.dimension_semantics<parallel>], iteration_bounds = array<i64: 2>, scalar_prefetch = 0 : i64, scratch_operands = 0 : i64, tpu.core_type = #tpu.core_type<tc>, window_params = [{transform_indices = @transform_0, window_bounds = array<i64: 1, 24, 256>}, {pipeline_mode = #tpu.pipeline_mode<synchronous>, transform_indices = @transform_1, window_bounds = array<i64: 24, 24>}, {pipeline_mode = #tpu.pipeline_mode<synchronous>, transform_indices = @transform_2, window_bounds = array<i64: 24, 1>}, {pipeline_mode = #tpu.pipeline_mode<synchronous>, transform_indices = @transform_3, window_bounds = array<i64: 4, 12>}, {pipeline_mode = #tpu.pipeline_mode<synchronous>, transform_indices = @transform_4, window_bounds = array<i64: 4, 12>}, {pipeline_mode = #tpu.pipeline_mode<synchronous>, transform_indices = @transform_5, window_bounds = array<i64: 4, 12>}, {pipeline_mode = #tpu.pipeline_mode<synchronous>, transform_indices = @transform_6, window_bounds = array<i64: 4, 12>}, {pipeline_mode = #tpu.pipeline_mode<synchronous>, transform_indices = @transform_7, window_bounds = array<i64: 4, 1>}, {pipeline_mode = #tpu.pipeline_mode<synchronous>, transform_indices = @transform_8, window_bounds = array<i64: 4, 1>}, {pipeline_mode = #tpu.pipeline_mode<synchronous>, transform_indices = @transform_9, window_bounds = array<i64: 4, 1>}, {pipeline_mode = #tpu.pipeline_mode<synchronous>, transform_indices = @transform_10, window_bounds = array<i64: 4, 1>}, {pipeline_mode = #tpu.pipeline_mode<synchronous>, transform_indices = @transform_11, window_bounds = array<i64: 4, 1>}, {pipeline_mode = #tpu.pipeline_mode<synchronous>, transform_indices = @transform_12, window_bounds = array<i64: 4, 1>}, {transform_indices = @transform_13, window_bounds = array<i64: 1, 24, 256>}]} {
    %c0 = arith.constant 0 : index
    %c0_0 = arith.constant 0 : index
    %c0_1 = arith.constant 0 : index
    %0 = vector.load %arg1[%c0, %c0_0, %c0_1] : memref<1x24x256xf32, #tpu.memory_space<vmem>>, vector<1x24x256xf32>
    %1 = vector.shape_cast %0 : vector<1x24x256xf32> to vector<24x256xf32>
    %c0_2 = arith.constant 0 : index
    %c0_3 = arith.constant 0 : index
    %2 = vector.load %arg2[%c0_2, %c0_3] : memref<24x24xf32, #tpu.memory_space<vmem>>, vector<24x24xf32>
    %cst = arith.constant dense<0.000000e+00> : vector<24x256xf32>
    %3 = tpu.matmul %2, %1, %cst {dimension_numbers = #tpu.dot_dimension_numbers<[1], [0], [0], [1], [0, 0, 1, 1], [], []>} : vector<24x24xf32>, vector<24x256xf32>, vector<24x256xf32> -> vector<24x256xf32>
    %c0_4 = arith.constant 0 : index
    %c0_5 = arith.constant 0 : index
    %4 = vector.load %arg3[%c0_4, %c0_5] : memref<24x1xf32, #tpu.memory_space<vmem>>, vector<24x1xf32>
    %5 = vector.broadcast %4 : vector<24x1xf32> to vector<24x256xf32>
    %6 = arith.addf %3, %5 : vector<24x256xf32>
    %7 = vector.extract_strided_slice %6 {offsets = [0, 0], sizes = [20, 256], strides = [1, 1]} : vector<24x256xf32> to vector<20x256xf32>
    %cst_6 = arith.constant 0.000000e+00 : f32
    %8 = vector.broadcast %cst_6 : f32 to vector<20x256xf32>
    %9 = arith.maximumf %7, %8 : vector<20x256xf32>
    %cst_7 = arith.constant 0.000000e+00 : f32
    %10 = vector.broadcast %cst_7 : f32 to vector<20x64xf32>
    %11 = tpu.concatenate %10, %9, %10 in 1 : vector<20x64xf32>, vector<20x256xf32>, vector<20x64xf32> -> vector<20x384xf32>
    %12 = vector.extract_strided_slice %11 {offsets = [0, 0], sizes = [4, 384], strides = [1, 1]} : vector<20x384xf32> to vector<4x384xf32>
    %13 = vector.extract_strided_slice %12 {offsets = [0, 48], sizes = [4, 256], strides = [1, 1]} : vector<4x384xf32> to vector<4x256xf32>
    %14 = vector.extract_strided_slice %12 {offsets = [0, 64], sizes = [4, 256], strides = [1, 1]} : vector<4x384xf32> to vector<4x256xf32>
    %15 = vector.extract_strided_slice %12 {offsets = [0, 80], sizes = [4, 256], strides = [1, 1]} : vector<4x384xf32> to vector<4x256xf32>
    %16 = tpu.concatenate %13, %14, %15 in 0 : vector<4x256xf32>, vector<4x256xf32>, vector<4x256xf32> -> vector<12x256xf32>
    %c0_8 = arith.constant 0 : index
    %c0_9 = arith.constant 0 : index
    %17 = vector.load %arg4[%c0_8, %c0_9] : memref<4x12xf32, #tpu.memory_space<vmem>>, vector<4x12xf32>
    %cst_10 = arith.constant dense<0.000000e+00> : vector<4x256xf32>
    %18 = tpu.matmul %17, %16, %cst_10 {dimension_numbers = #tpu.dot_dimension_numbers<[1], [0], [0], [1], [0, 0, 1, 1], [], []>} : vector<4x12xf32>, vector<12x256xf32>, vector<4x256xf32> -> vector<4x256xf32>
    %c0_11 = arith.constant 0 : index
    %c0_12 = arith.constant 0 : index
    %19 = vector.load %arg8[%c0_11, %c0_12] : memref<4x1xf32, #tpu.memory_space<vmem>>, vector<4x1xf32>
    %20 = vector.broadcast %19 : vector<4x1xf32> to vector<4x256xf32>
    %21 = arith.addf %18, %20 : vector<4x256xf32>
    %22 = vector.extract_strided_slice %11 {offsets = [4, 0], sizes = [4, 384], strides = [1, 1]} : vector<20x384xf32> to vector<4x384xf32>
    %23 = vector.extract_strided_slice %22 {offsets = [0, 32], sizes = [4, 256], strides = [1, 1]} : vector<4x384xf32> to vector<4x256xf32>
    %24 = vector.extract_strided_slice %22 {offsets = [0, 64], sizes = [4, 256], strides = [1, 1]} : vector<4x384xf32> to vector<4x256xf32>
    %25 = vector.extract_strided_slice %22 {offsets = [0, 96], sizes = [4, 256], strides = [1, 1]} : vector<4x384xf32> to vector<4x256xf32>
    %26 = tpu.concatenate %23, %24, %25 in 0 : vector<4x256xf32>, vector<4x256xf32>, vector<4x256xf32> -> vector<12x256xf32>
    %c0_13 = arith.constant 0 : index
    %c0_14 = arith.constant 0 : index
    %27 = vector.load %arg5[%c0_13, %c0_14] : memref<4x12xf32, #tpu.memory_space<vmem>>, vector<4x12xf32>
    %cst_15 = arith.constant dense<0.000000e+00> : vector<4x256xf32>
    %28 = tpu.matmul %27, %26, %cst_15 {dimension_numbers = #tpu.dot_dimension_numbers<[1], [0], [0], [1], [0, 0, 1, 1], [], []>} : vector<4x12xf32>, vector<12x256xf32>, vector<4x256xf32> -> vector<4x256xf32>
    %c0_16 = arith.constant 0 : index
    %c0_17 = arith.constant 0 : index
    %29 = vector.load %arg9[%c0_16, %c0_17] : memref<4x1xf32, #tpu.memory_space<vmem>>, vector<4x1xf32>
    %30 = vector.broadcast %29 : vector<4x1xf32> to vector<4x256xf32>
    %31 = arith.addf %28, %30 : vector<4x256xf32>
    %32 = vector.extract_strided_slice %11 {offsets = [8, 0], sizes = [4, 384], strides = [1, 1]} : vector<20x384xf32> to vector<4x384xf32>
    %33 = vector.extract_strided_slice %32 {offsets = [0, 16], sizes = [4, 256], strides = [1, 1]} : vector<4x384xf32> to vector<4x256xf32>
    %34 = vector.extract_strided_slice %32 {offsets = [0, 64], sizes = [4, 256], strides = [1, 1]} : vector<4x384xf32> to vector<4x256xf32>
    %35 = vector.extract_strided_slice %32 {offsets = [0, 112], sizes = [4, 256], strides = [1, 1]} : vector<4x384xf32> to vector<4x256xf32>
    %36 = tpu.concatenate %33, %34, %35 in 0 : vector<4x256xf32>, vector<4x256xf32>, vector<4x256xf32> -> vector<12x256xf32>
    %c0_18 = arith.constant 0 : index
    %c0_19 = arith.constant 0 : index
    %37 = vector.load %arg6[%c0_18, %c0_19] : memref<4x12xf32, #tpu.memory_space<vmem>>, vector<4x12xf32>
    %cst_20 = arith.constant dense<0.000000e+00> : vector<4x256xf32>
    %38 = tpu.matmul %37, %36, %cst_20 {dimension_numbers = #tpu.dot_dimension_numbers<[1], [0], [0], [1], [0, 0, 1, 1], [], []>} : vector<4x12xf32>, vector<12x256xf32>, vector<4x256xf32> -> vector<4x256xf32>
    %c0_21 = arith.constant 0 : index
    %c0_22 = arith.constant 0 : index
    %39 = vector.load %arg10[%c0_21, %c0_22] : memref<4x1xf32, #tpu.memory_space<vmem>>, vector<4x1xf32>
    %40 = vector.broadcast %39 : vector<4x1xf32> to vector<4x256xf32>
    %41 = arith.addf %38, %40 : vector<4x256xf32>
    %42 = vector.extract_strided_slice %11 {offsets = [12, 0], sizes = [4, 384], strides = [1, 1]} : vector<20x384xf32> to vector<4x384xf32>
    %43 = vector.extract_strided_slice %42 {offsets = [0, 0], sizes = [4, 256], strides = [1, 1]} : vector<4x384xf32> to vector<4x256xf32>
    %44 = vector.extract_strided_slice %42 {offsets = [0, 64], sizes = [4, 256], strides = [1, 1]} : vector<4x384xf32> to vector<4x256xf32>
    %45 = vector.extract_strided_slice %42 {offsets = [0, 128], sizes = [4, 256], strides = [1, 1]} : vector<4x384xf32> to vector<4x256xf32>
    %46 = tpu.concatenate %43, %44, %45 in 0 : vector<4x256xf32>, vector<4x256xf32>, vector<4x256xf32> -> vector<12x256xf32>
    %c0_23 = arith.constant 0 : index
    %c0_24 = arith.constant 0 : index
    %47 = vector.load %arg7[%c0_23, %c0_24] : memref<4x12xf32, #tpu.memory_space<vmem>>, vector<4x12xf32>
    %cst_25 = arith.constant dense<0.000000e+00> : vector<4x256xf32>
    %48 = tpu.matmul %47, %46, %cst_25 {dimension_numbers = #tpu.dot_dimension_numbers<[1], [0], [0], [1], [0, 0, 1, 1], [], []>} : vector<4x12xf32>, vector<12x256xf32>, vector<4x256xf32> -> vector<4x256xf32>
    %c0_26 = arith.constant 0 : index
    %c0_27 = arith.constant 0 : index
    %49 = vector.load %arg11[%c0_26, %c0_27] : memref<4x1xf32, #tpu.memory_space<vmem>>, vector<4x1xf32>
    %50 = vector.broadcast %49 : vector<4x1xf32> to vector<4x256xf32>
    %51 = arith.addf %48, %50 : vector<4x256xf32>
    %52 = vector.extract_strided_slice %11 {offsets = [16, 0], sizes = [4, 384], strides = [1, 1]} : vector<20x384xf32> to vector<4x384xf32>
    %53 = vector.extract_strided_slice %52 {offsets = [0, 48], sizes = [4, 256], strides = [1, 1]} : vector<4x384xf32> to vector<4x256xf32>
    %54 = vector.extract_strided_slice %52 {offsets = [0, 64], sizes = [4, 256], strides = [1, 1]} : vector<4x384xf32> to vector<4x256xf32>
    %55 = arith.maximumf %53, %54 : vector<4x256xf32>
    %56 = vector.extract_strided_slice %52 {offsets = [0, 80], sizes = [4, 256], strides = [1, 1]} : vector<4x384xf32> to vector<4x256xf32>
    %57 = arith.maximumf %55, %56 : vector<4x256xf32>
    %c0_28 = arith.constant 0 : index
    %c0_29 = arith.constant 0 : index
    %58 = vector.load %arg12[%c0_28, %c0_29] : memref<4x1xf32, #tpu.memory_space<vmem>>, vector<4x1xf32>
    %59 = vector.broadcast %58 : vector<4x1xf32> to vector<4x256xf32>
    %60 = arith.mulf %57, %59 : vector<4x256xf32>
    %c0_30 = arith.constant 0 : index
    %c0_31 = arith.constant 0 : index
    %61 = vector.load %arg13[%c0_30, %c0_31] : memref<4x1xf32, #tpu.memory_space<vmem>>, vector<4x1xf32>
    %62 = vector.broadcast %61 : vector<4x1xf32> to vector<4x256xf32>
    %63 = arith.addf %60, %62 : vector<4x256xf32>
    %64 = vector.extract_strided_slice %6 {offsets = [20, 0], sizes = [4, 256], strides = [1, 1]} : vector<24x256xf32> to vector<4x256xf32>
    %65 = tpu.concatenate %21, %31, %41, %51, %63, %64 in 0 : vector<4x256xf32>, vector<4x256xf32>, vector<4x256xf32>, vector<4x256xf32>, vector<4x256xf32>, vector<4x256xf32> -> vector<24x256xf32>
    %66 = arith.addf %65, %1 : vector<24x256xf32>
    %c0_32 = arith.constant 0 : index
    %c0_33 = arith.constant 0 : index
    %c0_34 = arith.constant 0 : index
    %67 = vector.load %arg14[%c0_32, %c0_33, %c0_34] : memref<1x24x256xf32, #tpu.memory_space<vmem>>, vector<1x24x256xf32>
    %68 = vector.shape_cast %67 : vector<1x24x256xf32> to vector<24x256xf32>
    %69 = vector.shape_cast %66 : vector<24x256xf32> to vector<1x24x256xf32>
    tpu.vector_store %arg14[%c0_32, %c0_33, %c0_34], %69 {strides = array<i32>} : memref<1x24x256xf32, #tpu.memory_space<vmem>>, vector<1x24x256xf32>,
    return
  }
  func.func @transform_0(%arg0: i32) -> (i32, i32, i32) {
    %c0_i32 = arith.constant 0 : i32
    %c0_i32_0 = arith.constant 0 : i32
    %c0_i32_1 = arith.constant 0 : i32
    return %arg0, %c0_i32, %c0_i32_0 : i32, i32, i32
  }
  func.func @transform_1(%arg0: i32) -> (i32, i32) {
    %c0_i32 = arith.constant 0 : i32
    %c0_i32_0 = arith.constant 0 : i32
    %c0_i32_1 = arith.constant 0 : i32
    return %c0_i32, %c0_i32_0 : i32, i32
  }
  func.func @transform_2(%arg0: i32) -> (i32, i32) {
    %c0_i32 = arith.constant 0 : i32
    %c0_i32_0 = arith.constant 0 : i32
    %c0_i32_1 = arith.constant 0 : i32
    return %c0_i32, %c0_i32_0 : i32, i32
  }
  func.func @transform_3(%arg0: i32) -> (i32, i32) {
    %c0_i32 = arith.constant 0 : i32
    %c0_i32_0 = arith.constant 0 : i32
    %c0_i32_1 = arith.constant 0 : i32
    return %c0_i32, %c0_i32_0 : i32, i32
  }
  func.func @transform_4(%arg0: i32) -> (i32, i32) {
    %c0_i32 = arith.constant 0 : i32
    %c0_i32_0 = arith.constant 0 : i32
    %c0_i32_1 = arith.constant 0 : i32
    return %c0_i32, %c0_i32_0 : i32, i32
  }
  func.func @transform_5(%arg0: i32) -> (i32, i32) {
    %c0_i32 = arith.constant 0 : i32
    %c0_i32_0 = arith.constant 0 : i32
    %c0_i32_1 = arith.constant 0 : i32
    return %c0_i32, %c0_i32_0 : i32, i32
  }
  func.func @transform_6(%arg0: i32) -> (i32, i32) {
    %c0_i32 = arith.constant 0 : i32
    %c0_i32_0 = arith.constant 0 : i32
    %c0_i32_1 = arith.constant 0 : i32
    return %c0_i32, %c0_i32_0 : i32, i32
  }
  func.func @transform_7(%arg0: i32) -> (i32, i32) {
    %c0_i32 = arith.constant 0 : i32
    %c0_i32_0 = arith.constant 0 : i32
    %c0_i32_1 = arith.constant 0 : i32
    return %c0_i32, %c0_i32_0 : i32, i32
  }
  func.func @transform_8(%arg0: i32) -> (i32, i32) {
    %c0_i32 = arith.constant 0 : i32
    %c0_i32_0 = arith.constant 0 : i32
    %c0_i32_1 = arith.constant 0 : i32
    return %c0_i32, %c0_i32_0 : i32, i32
  }
  func.func @transform_9(%arg0: i32) -> (i32, i32) {
    %c0_i32 = arith.constant 0 : i32
    %c0_i32_0 = arith.constant 0 : i32
    %c0_i32_1 = arith.constant 0 : i32
    return %c0_i32, %c0_i32_0 : i32, i32
  }
  func.func @transform_10(%arg0: i32) -> (i32, i32) {
    %c0_i32 = arith.constant 0 : i32
    %c0_i32_0 = arith.constant 0 : i32
    %c0_i32_1 = arith.constant 0 : i32
    return %c0_i32, %c0_i32_0 : i32, i32
  }
  func.func @transform_11(%arg0: i32) -> (i32, i32) {
    %c0_i32 = arith.constant 0 : i32
    %c0_i32_0 = arith.constant 0 : i32
    %c0_i32_1 = arith.constant 0 : i32
    return %c0_i32, %c0_i32_0 : i32, i32
  }
  func.func @transform_12(%arg0: i32) -> (i32, i32) {
    %c0_i32 = arith.constant 0 : i32
    %c0_i32_0 = arith.constant 0 : i32
    %c0_i32_1 = arith.constant 0 : i32
    return %c0_i32, %c0_i32_0 : i32, i32
  }
  func.func @transform_13(%arg0: i32) -> (i32, i32, i32) {
    %c0_i32 = arith.constant 0 : i32
    %c0_i32_0 = arith.constant 0 : i32
    %c0_i32_1 = arith.constant 0 : i32
    return %arg0, %c0_i32, %c0_i32_0 : i32, i32, i32
  }
}

</mosaic_0001>

<llo_original>
// kernel: tpu_custom_call.1
$region0: #{tpu_custom_call.1}
  #allocation0 [shape = 'u32[]', space=smem, size = 0x4, offset = 0x4, fixed_abs, tag = 'smem constant byte address 0x4 - core index']
  #allocation1 [shape = 'u32[144,128]{1,0:T(1,128)}', space=vmem, size = 0x12000, scoped, tag = 'internal scratch']
  %s0 = inlined_call_operand.hbm [shape: f32[2,24,256], index: 0, kind: input, shape index: {}]
  %s1 = inlined_call_operand.vmem [shape: f32[24,24], index: 1, kind: input, shape index: {}]
  %s2 = inlined_call_operand.vmem [shape: f32[24,1], index: 2, kind: input, shape index: {}]
  %s3 = inlined_call_operand.vmem [shape: f32[4,12], index: 3, kind: input, shape index: {}]
  %s4 = inlined_call_operand.vmem [shape: f32[4,12], index: 4, kind: input, shape index: {}]
  %s5 = inlined_call_operand.vmem [shape: f32[4,12], index: 5, kind: input, shape index: {}]
  %s6 = inlined_call_operand.vmem [shape: f32[4,12], index: 6, kind: input, shape index: {}]
  %s7 = inlined_call_operand.vmem [shape: f32[4,1], index: 7, kind: input, shape index: {}]
  %s8 = inlined_call_operand.vmem [shape: f32[4,1], index: 8, kind: input, shape index: {}]
  %s9 = inlined_call_operand.vmem [shape: f32[4,1], index: 9, kind: input, shape index: {}]
  %s10 = inlined_call_operand.vmem [shape: f32[4,1], index: 10, kind: input, shape index: {}]
  %s11 = inlined_call_operand.vmem [shape: f32[4,1], index: 11, kind: input, shape index: {}]
  %s12 = inlined_call_operand.vmem [shape: f32[4,1], index: 12, kind: input, shape index: {}]
  %s13 = inlined_call_operand.hbm [shape: f32[2,24,256], index: 13, kind: output, shape index: {}]
  %s14 = sld [smem:[#allocation0]]
  $region89: #{tpu_custom_call.1} parent=0
    _
  %s16 = ssub.s32 1, %s14
  %s17 = scalar_select 0, %s16, %s14
  $region1: #{tpu_custom_call.1} parent=0
    #allocation2 [shape = 'u8[49152]{0}', space=vmem, size = 0xc000, scoped, tag = 'input window, operand 0']
    #allocation3 [shape = 's32[2]{0}', space=sflag, size = 0x8, scoped, tag = 'scoped memory for tpu_custom_call.1']
    #allocation4 [shape = 's32[2]{0}', space=sflag, size = 0x8, scoped, tag = 'scoped memory for tpu_custom_call.1']
    #allocation5 [shape = 'u8[49152]{0}', space=vmem, size = 0xc000, scoped, tag = 'output window, operand 0']
    %18 = vsyncpa [#allocation3], 0
    %s19 = scalar_lea.sflag [#allocation3], 1
    %20 = vsyncpa %s19, 0
    %21 = vsyncpa [#allocation4], 0
    %s22 = scalar_lea.sflag [#allocation4], 1
    %23 = vsyncpa %s22, 0
    loop: start=0, step=1, limit=4
    $region2: #{tpu_custom_call.1} parent=1 // loop_pre_header
      _
    $region3: #{tpu_custom_call.1} parent=1 // loop_header
      %s25 = sphi 0, %s29
      %p26 = scmp.ge.s32.totalorder %s25, 4
      %s35 = sphi 0, %s37
      %s38 = sphi 0, %s35
      %s39 = sphi 0, %s38
      %s55 = sphi 0, %s39
      %s59 = sphi 0, %s59
      %s61 = sphi 0, %s59
      %s62 = sphi 0, %s61
      %s76 = sphi 0, %s62
      %s80 = sphi 0, %s80
      %s82 = sphi 0, %s80
      %s83 = sphi 0, %s82
      %s97 = sphi 0, %s83
      %s101 = sphi 0, %s101
      %s103 = sphi 0, %s101
      %s104 = sphi 0, %s103
      %s118 = sphi 0, %s104
      %s122 = sphi 0, %s122
      %s124 = sphi 0, %s122
      %s125 = sphi 0, %s124
      %s139 = sphi 0, %s125
      %s143 = sphi 0, %s143
      %s145 = sphi 0, %s143
      %s146 = sphi 0, %s145
      %s160 = sphi 0, %s146
      %s164 = sphi 0, %s164
      %s166 = sphi 0, %s164
      %s167 = sphi 0, %s166
      %s181 = sphi 0, %s167
      %s185 = sphi 0, %s185
      %s187 = sphi 0, %s185
      %s188 = sphi 0, %s187
      %s202 = sphi 0, %s188
      %s206 = sphi 0, %s206
      %s208 = sphi 0, %s206
      %s209 = sphi 0, %s208
      %s223 = sphi 0, %s209
      %s227 = sphi 0, %s227
      %s229 = sphi 0, %s227
      %s230 = sphi 0, %s229
      %s244 = sphi 0, %s230
      %s248 = sphi 0, %s248
      %s250 = sphi 0, %s248
      %s251 = sphi 0, %s250
      %s265 = sphi 0, %s251
      %s269 = sphi 0, %s269
      %s271 = sphi 0, %s269
      %s272 = sphi 0, %s271
      %s286 = sphi 0, %s272
      %s290 = sphi 0, %s290
      %s292 = sphi 0, %s290
      %s293 = sphi 0, %s292
      %s307 = sphi 0, %s293
      %s313 = sphi 0, %s315
      %s316 = sphi 0, %s313
      %s317 = sphi 0, %s316
      %s333 = sphi 0, %s317
    $region4: #{tpu_custom_call.1} parent=1 // loop_header_branch
      %28 = sbr.rel (%p26) target = $region8
    $region5: #{tpu_custom_call.1} parent=1 // loop_body
      %s30 = ssub.s32 %s25, 1
      %s31 = ssub.s32 %s25, 2
      %s32 = sadd.s32 %s25, 1
      %s33 = ssub.s32 %s25, %s32
      %p34 = scmp.eq.s32.totalorder %s33, 0
      %s36 = sadd.s32 %s35, 1
      %s37 = scalar_select %p34, %s35, %s36
      %p40 = pneg %p34
      %p41 = scmp.eq.s32.totalorder %s25, 1
      %p42 = por %p40, %p41
      %p43 = scmp.ne.s32.totalorder %s35, %s38
      %p44 = scmp.eq.s32.totalorder %s25, 0
      %p45 = por %p43, %p44
      %p46 = scmp.ne.s32.totalorder %s35, %s38
      %p47 = scmp.eq.s32.totalorder %s30, 1
      %p48 = por %p46, %p47
      %p49 = scmp.ne.s32.totalorder %s38, %s39
      %p50 = scmp.eq.s32.totalorder %s30, 0
      %p51 = por %p49, %p50
      %p52 = scmp.ne.s32.totalorder %s38, %s39
      %p53 = scmp.eq.s32.totalorder %s31, 1
      %p54 = por %p52, %p53
      %p56 = scmp.ne.s32.totalorder %s39, %s55
      %p57 = scmp.eq.s32.totalorder %s31, 0
      %p58 = por %p56, %p57
      %s60 = sadd.s32 %s59, 1
      %p63 = scmp.eq.s32.totalorder %s25, 1
      %p64 = scmp.ne.s32.totalorder %s59, %s61
      %p65 = scmp.eq.s32.totalorder %s25, 0
      %p66 = por %p64, %p65
      %p67 = scmp.ne.s32.totalorder %s59, %s61
      %p68 = scmp.eq.s32.totalorder %s30, 1
      %p69 = por %p67, %p68
      %p70 = scmp.ne.s32.totalorder %s61, %s62
      %p71 = scmp.eq.s32.totalorder %s30, 0
      %p72 = por %p70, %p71
      %p73 = scmp.ne.s32.totalorder %s61, %s62
      %p74 = scmp.eq.s32.totalorder %s31, 1
      %p75 = por %p73, %p74
      %p77 = scmp.ne.s32.totalorder %s62, %s76
      %p78 = scmp.eq.s32.totalorder %s31, 0
      %p79 = por %p77, %p78
      %s81 = sadd.s32 %s80, 1
      %p84 = scmp.eq.s32.totalorder %s25, 1
      %p85 = scmp.ne.s32.totalorder %s80, %s82
      %p86 = scmp.eq.s32.totalorder %s25, 0
      %p87 = por %p85, %p86
      %p88 = scmp.ne.s32.totalorder %s80, %s82
      %p89 = scmp.eq.s32.totalorder %s30, 1
      %p90 = por %p88, %p89
      %p91 = scmp.ne.s32.totalorder %s82, %s83
      %p92 = scmp.eq.s32.totalorder %s30, 0
      %p93 = por %p91, %p92
      %p94 = scmp.ne.s32.totalorder %s82, %s83
      %p95 = scmp.eq.s32.totalorder %s31, 1
      %p96 = por %p94, %p95
      %p98 = scmp.ne.s32.totalorder %s83, %s97
      %p99 = scmp.eq.s32.totalorder %s31, 0
      %p100 = por %p98, %p99
      %s102 = sadd.s32 %s101, 1
      %p105 = scmp.eq.s32.totalorder %s25, 1
      %p106 = scmp.ne.s32.totalorder %s101, %s103
      %p107 = scmp.eq.s32.totalorder %s25, 0
      %p108 = por %p106, %p107
      %p109 = scmp.ne.s32.totalorder %s101, %s103
      %p110 = scmp.eq.s32.totalorder %s30, 1
      %p111 = por %p109, %p110
      %p112 = scmp.ne.s32.totalorder %s103, %s104
      %p113 = scmp.eq.s32.totalorder %s30, 0
      %p114 = por %p112, %p113
      %p115 = scmp.ne.s32.totalorder %s103, %s104
      %p116 = scmp.eq.s32.totalorder %s31, 1
      %p117 = por %p115, %p116
      %p119 = scmp.ne.s32.totalorder %s104, %s118
      %p120 = scmp.eq.s32.totalorder %s31, 0
      %p121 = por %p119, %p120
      %s123 = sadd.s32 %s122, 1
      %p126 = scmp.eq.s32.totalorder %s25, 1
      %p127 = scmp.ne.s32.totalorder %s122, %s124
      %p128 = scmp.eq.s32.totalorder %s25, 0
      %p129 = por %p127, %p128
      %p130 = scmp.ne.s32.totalorder %s122, %s124
      %p131 = scmp.eq.s32.totalorder %s30, 1
      %p132 = por %p130, %p131
      %p133 = scmp.ne.s32.totalorder %s124, %s125
      %p134 = scmp.eq.s32.totalorder %s30, 0
      %p135 = por %p133, %p134
      %p136 = scmp.ne.s32.totalorder %s124, %s125
      %p137 = scmp.eq.s32.totalorder %s31, 1
      %p138 = por %p136, %p137
      %p140 = scmp.ne.s32.totalorder %s125, %s139
      %p141 = scmp.eq.s32.totalorder %s31, 0
      %p142 = por %p140, %p141
      %s144 = sadd.s32 %s143, 1
      %p147 = scmp.eq.s32.totalorder %s25, 1
      %p148 = scmp.ne.s32.totalorder %s143, %s145
      %p149 = scmp.eq.s32.totalorder %s25, 0
      %p150 = por %p148, %p149
      %p151 = scmp.ne.s32.totalorder %s143, %s145
      %p152 = scmp.eq.s32.totalorder %s30, 1
      %p153 = por %p151, %p152
      %p154 = scmp.ne.s32.totalorder %s145, %s146
      %p155 = scmp.eq.s32.totalorder %s30, 0
      %p156 = por %p154, %p155
      %p157 = scmp.ne.s32.totalorder %s145, %s146
      %p158 = scmp.eq.s32.totalorder %s31, 1
      %p159 = por %p157, %p158
      %p161 = scmp.ne.s32.totalorder %s146, %s160
      %p162 = scmp.eq.s32.totalorder %s31, 0
      %p163 = por %p161, %p162
      %s165 = sadd.s32 %s164, 1
      %p168 = scmp.eq.s32.totalorder %s25, 1
      %p169 = scmp.ne.s32.totalorder %s164, %s166
      %p170 = scmp.eq.s32.totalorder %s25, 0
      %p171 = por %p169, %p170
      %p172 = scmp.ne.s32.totalorder %s164, %s166
      %p173 = scmp.eq.s32.totalorder %s30, 1
      %p174 = por %p172, %p173
      %p175 = scmp.ne.s32.totalorder %s166, %s167
      %p176 = scmp.eq.s32.totalorder %s30, 0
      %p177 = por %p175, %p176
      %p178 = scmp.ne.s32.totalorder %s166, %s167
      %p179 = scmp.eq.s32.totalorder %s31, 1
      %p180 = por %p178, %p179
      %p182 = scmp.ne.s32.totalorder %s167, %s181
      %p183 = scmp.eq.s32.totalorder %s31, 0
      %p184 = por %p182, %p183
      %s186 = sadd.s32 %s185, 1
      %p189 = scmp.eq.s32.totalorder %s25, 1
      %p190 = scmp.ne.s32.totalorder %s185, %s187
      %p191 = scmp.eq.s32.totalorder %s25, 0
      %p192 = por %p190, %p191
      %p193 = scmp.ne.s32.totalorder %s185, %s187
      %p194 = scmp.eq.s32.totalorder %s30, 1
      %p195 = por %p193, %p194
      %p196 = scmp.ne.s32.totalorder %s187, %s188
      %p197 = scmp.eq.s32.totalorder %s30, 0
      %p198 = por %p196, %p197
      %p199 = scmp.ne.s32.totalorder %s187, %s188
      %p200 = scmp.eq.s32.totalorder %s31, 1
      %p201 = por %p199, %p200
      %p203 = scmp.ne.s32.totalorder %s188, %s202
      %p204 = scmp.eq.s32.totalorder %s31, 0
      %p205 = por %p203, %p204
      %s207 = sadd.s32 %s206, 1
      %p210 = scmp.eq.s32.totalorder %s25, 1
      %p211 = scmp.ne.s32.totalorder %s206, %s208
      %p212 = scmp.eq.s32.totalorder %s25, 0
      %p213 = por %p211, %p212
      %p214 = scmp.ne.s32.totalorder %s206, %s208
      %p215 = scmp.eq.s32.totalorder %s30, 1
      %p216 = por %p214, %p215
      %p217 = scmp.ne.s32.totalorder %s208, %s209
      %p218 = scmp.eq.s32.totalorder %s30, 0
      %p219 = por %p217, %p218
      %p220 = scmp.ne.s32.totalorder %s208, %s209
      %p221 = scmp.eq.s32.totalorder %s31, 1
      %p222 = por %p220, %p221
      %p224 = scmp.ne.s32.totalorder %s209, %s223
      %p225 = scmp.eq.s32.totalorder %s31, 0
      %p226 = por %p224, %p225
      %s228 = sadd.s32 %s227, 1
      %p231 = scmp.eq.s32.totalorder %s25, 1
      %p232 = scmp.ne.s32.totalorder %s227, %s229
      %p233 = scmp.eq.s32.totalorder %s25, 0
      %p234 = por %p232, %p233
      %p235 = scmp.ne.s32.totalorder %s227, %s229
      %p236 = scmp.eq.s32.totalorder %s30, 1
      %p237 = por %p235, %p236
      %p238 = scmp.ne.s32.totalorder %s229, %s230
      %p239 = scmp.eq.s32.totalorder %s30, 0
      %p240 = por %p238, %p239
      %p241 = scmp.ne.s32.totalorder %s229, %s230
      %p242 = scmp.eq.s32.totalorder %s31, 1
      %p243 = por %p241, %p242
      %p245 = scmp.ne.s32.totalorder %s230, %s244
      %p246 = scmp.eq.s32.totalorder %s31, 0
      %p247 = por %p245, %p246
      %s249 = sadd.s32 %s248, 1
      %p252 = scmp.eq.s32.totalorder %s25, 1
      %p253 = scmp.ne.s32.totalorder %s248, %s250
      %p254 = scmp.eq.s32.totalorder %s25, 0
      %p255 = por %p253, %p254
      %p256 = scmp.ne.s32.totalorder %s248, %s250
      %p257 = scmp.eq.s32.totalorder %s30, 1
      %p258 = por %p256, %p257
      %p259 = scmp.ne.s32.totalorder %s250, %s251
      %p260 = scmp.eq.s32.totalorder %s30, 0
      %p261 = por %p259, %p260
      %p262 = scmp.ne.s32.totalorder %s250, %s251
      %p263 = scmp.eq.s32.totalorder %s31, 1
      %p264 = por %p262, %p263
      %p266 = scmp.ne.s32.totalorder %s251, %s265
      %p267 = scmp.eq.s32.totalorder %s31, 0
      %p268 = por %p266, %p267
      %s270 = sadd.s32 %s269, 1
      %p273 = scmp.eq.s32.totalorder %s25, 1
      %p274 = scmp.ne.s32.totalorder %s269, %s271
      %p275 = scmp.eq.s32.totalorder %s25, 0
      %p276 = por %p274, %p275
      %p277 = scmp.ne.s32.totalorder %s269, %s271
      %p278 = scmp.eq.s32.totalorder %s30, 1
      %p279 = por %p277, %p278
      %p280 = scmp.ne.s32.totalorder %s271, %s272
      %p281 = scmp.eq.s32.totalorder %s30, 0
      %p282 = por %p280, %p281
      %p283 = scmp.ne.s32.totalorder %s271, %s272
      %p284 = scmp.eq.s32.totalorder %s31, 1
      %p285 = por %p283, %p284
      %p287 = scmp.ne.s32.totalorder %s272, %s286
      %p288 = scmp.eq.s32.totalorder %s31, 0
      %p289 = por %p287, %p288
      %s291 = sadd.s32 %s290, 1
      %p294 = scmp.eq.s32.totalorder %s25, 1
      %p295 = scmp.ne.s32.totalorder %s290, %s292
      %p296 = scmp.eq.s32.totalorder %s25, 0
      %p297 = por %p295, %p296
      %p298 = scmp.ne.s32.totalorder %s290, %s292
      %p299 = scmp.eq.s32.totalorder %s30, 1
      %p300 = por %p298, %p299
      %p301 = scmp.ne.s32.totalorder %s292, %s293
      %p302 = scmp.eq.s32.totalorder %s30, 0
      %p303 = por %p301, %p302
      %p304 = scmp.ne.s32.totalorder %s292, %s293
      %p305 = scmp.eq.s32.totalorder %s31, 1
      %p306 = por %p304, %p305
      %p308 = scmp.ne.s32.totalorder %s293, %s307
      %p309 = scmp.eq.s32.totalorder %s31, 0
      %p310 = por %p308, %p309
      %s311 = ssub.s32 %s25, %s32
      %p312 = scmp.eq.s32.totalorder %s311, 0
      %s314 = sadd.s32 %s313, 1
      %s315 = scalar_select %p312, %s313, %s314
      %p318 = pneg %p312
      %p319 = scmp.eq.s32.totalorder %s25, 1
      %p320 = por %p318, %p319
      %p321 = scmp.ne.s32.totalorder %s313, %s316
      %p322 = scmp.eq.s32.totalorder %s25, 0
      %p323 = por %p321, %p322
      %p324 = scmp.ne.s32.totalorder %s313, %s316
      %p325 = scmp.eq.s32.totalorder %s30, 1
      %p326 = por %p324, %p325
      %p327 = scmp.ne.s32.totalorder %s316, %s317
      %p328 = scmp.eq.s32.totalorder %s30, 0
      %p329 = por %p327, %p328
      %p330 = scmp.ne.s32.totalorder %s316, %s317
      %p331 = scmp.eq.s32.totalorder %s31, 1
      %p332 = por %p330, %p331
      %p334 = scmp.ne.s32.totalorder %s317, %s333
      %p335 = scmp.eq.s32.totalorder %s31, 0
      %p336 = por %p334, %p335
      %p337 = scmp.le.s32.totalorder 1, %s25
      %p338 = scmp.lt.s32.totalorder %s25, 3
      %p339 = pnand %p337, %p338
      %p340 = pneg %p339
      // Predicated region
      $region9: #{tpu_custom_call.1} parent=5 // pred_check
        _
      $region10: #{tpu_custom_call.1} parent=5 // pred_check_branch
        %342 = sbr.rel (%p339) target = $region12
      $region11: #{tpu_custom_call.1} parent=5 // pred_region
        %s343 = ssub.s32 %s25, 1
        // Predicated region
        $region13: #{tpu_custom_call.1} parent=11 // pred_check
          %p344 = pneg %p72
        $region14: #{tpu_custom_call.1} parent=11 // pred_check_branch
          %346 = sbr.rel (%p344) target = $region16
        $region15: #{tpu_custom_call.1} parent=11 // pred_region
          _
        $region16: #{tpu_custom_call.1} parent=11 // pred_fallthru
          _
        // Predicated region
        $region17: #{tpu_custom_call.1} parent=11 // pred_check
          %p347 = pneg %p93
        $region18: #{tpu_custom_call.1} parent=11 // pred_check_branch
          %349 = sbr.rel (%p347) target = $region20
        $region19: #{tpu_custom_call.1} parent=11 // pred_region
          _
        $region20: #{tpu_custom_call.1} parent=11 // pred_fallthru
          _
        // Predicated region
        $region21: #{tpu_custom_call.1} parent=11 // pred_check
          %p350 = pneg %p114
        $region22: #{tpu_custom_call.1} parent=11 // pred_check_branch
          %352 = sbr.rel (%p350) target = $region24
        $region23: #{tpu_custom_call.1} parent=11 // pred_region
          _
        $region24: #{tpu_custom_call.1} parent=11 // pred_fallthru
          _
        // Predicated region
        $region25: #{tpu_custom_call.1} parent=11 // pred_check
          %p353 = pneg %p135
        $region26: #{tpu_custom_call.1} parent=11 // pred_check_branch
          %355 = sbr.rel (%p353) target = $region28
        $region27: #{tpu_custom_call.1} parent=11 // pred_region
          _
        $region28: #{tpu_custom_call.1} parent=11 // pred_fallthru
          _
        // Predicated region
        $region29: #{tpu_custom_call.1} parent=11 // pred_check
          %p356 = pneg %p156
        $region30: #{tpu_custom_call.1} parent=11 // pred_check_branch
          %358 = sbr.rel (%p356) target = $region32
        $region31: #{tpu_custom_call.1} parent=11 // pred_region
          _
        $region32: #{tpu_custom_call.1} parent=11 // pred_fallthru
          _
        // Predicated region
        $region33: #{tpu_custom_call.1} parent=11 // pred_check
          %p359 = pneg %p177
        $region34: #{tpu_custom_call.1} parent=11 // pred_check_branch
          %361 = sbr.rel (%p359) target = $region36
        $region35: #{tpu_custom_call.1} parent=11 // pred_region
          _
        $region36: #{tpu_custom_call.1} parent=11 // pred_fallthru
          _
        // Predicated region
        $region37: #{tpu_custom_call.1} parent=11 // pred_check
          %p362 = pneg %p198
        $region38: #{tpu_custom_call.1} parent=11 // pred_check_branch
          %364 = sbr.rel (%p362) target = $region40
        $region39: #{tpu_custom_call.1} parent=11 // pred_region
          _
        $region40: #{tpu_custom_call.1} parent=11 // pred_fallthru
          _
        // Predicated region
        $region41: #{tpu_custom_call.1} parent=11 // pred_check
          %p365 = pneg %p219
        $region42: #{tpu_custom_call.1} parent=11 // pred_check_branch
          %367 = sbr.rel (%p365) target = $region44
        $region43: #{tpu_custom_call.1} parent=11 // pred_region
          _
        $region44: #{tpu_custom_call.1} parent=11 // pred_fallthru
          _
        // Predicated region
        $region45: #{tpu_custom_call.1} parent=11 // pred_check
          %p368 = pneg %p240
        $region46: #{tpu_custom_call.1} parent=11 // pred_check_branch
          %370 = sbr.rel (%p368) target = $region48
        $region47: #{tpu_custom_call.1} parent=11 // pred_region
          _
        $region48: #{tpu_custom_call.1} parent=11 // pred_fallthru
          _
        // Predicated region
        $region49: #{tpu_custom_call.1} parent=11 // pred_check
          %p371 = pneg %p261
        $region50: #{tpu_custom_call.1} parent=11 // pred_check_branch
          %373 = sbr.rel (%p371) target = $region52
        $region51: #{tpu_custom_call.1} parent=11 // pred_region
          _
        $region52: #{tpu_custom_call.1} parent=11 // pred_fallthru
          _
        // Predicated region
        $region53: #{tpu_custom_call.1} parent=11 // pred_check
          %p374 = pneg %p282
        $region54: #{tpu_custom_call.1} parent=11 // pred_check_branch
          %376 = sbr.rel (%p374) target = $region56
        $region55: #{tpu_custom_call.1} parent=11 // pred_region
          _
        $region56: #{tpu_custom_call.1} parent=11 // pred_fallthru
          _
        // Predicated region
        $region57: #{tpu_custom_call.1} parent=11 // pred_check
          %p377 = pneg %p303
        $region58: #{tpu_custom_call.1} parent=11 // pred_check_branch
          %379 = sbr.rel (%p377) target = $region60
        $region59: #{tpu_custom_call.1} parent=11 // pred_region
          _
        $region60: #{tpu_custom_call.1} parent=11 // pred_fallthru
          _
      $region12: #{tpu_custom_call.1} parent=5 // pred_fallthru
        _
      %p380 = scmp.lt.s32.totalorder %s25, 2
      // Predicated region
      $region61: #{tpu_custom_call.1} parent=5 // pred_check
        %p381 = pneg %p380
      $region62: #{tpu_custom_call.1} parent=5 // pred_check_branch
        %383 = sbr.rel (%p381) target = $region64
      $region63: #{tpu_custom_call.1} parent=5 // pred_region
        // Predicated region
        $region65: #{tpu_custom_call.1} parent=63 // pred_check
          %p384 = pneg %p45
        $region66: #{tpu_custom_call.1} parent=63 // pred_check_branch
          %386 = sbr.rel (%p384) target = $region68
        $region67: #{tpu_custom_call.1} parent=63 // pred_region
          %s387 = sand.u32 %s35, 1
          %s388 = scalar_lea.sflag [#allocation3], %s387
          %s389 = sand.u32 %s35, 1
          %s390 = smul.addr %s389, 48
          %s391 = scalar_lea.vmem [#allocation2], %s390
          %s393 = ssub.s32 768, 768
          %394 = vsyncadd %s388, %s393
          %s395 = smul.addr %s25, 6
          %s396 = smul.addr %s395, 128
          %s397 = scalar_lea.hbm %s0, %s396
          %s398 = sshll.u32 %s391, 4
          %s399 = int_to_ptr.vmem [resolvable:$true] %s398
          %404 = dma.hbm_to_vmem [thread:$0]  %s397, 768, %s399, %s388, 256, 256, 16
        $region68: #{tpu_custom_call.1} parent=63 // pred_fallthru
          _
      $region64: #{tpu_custom_call.1} parent=5 // pred_fallthru
        _
      %p405 = scmp.le.s32.totalorder 1, %s25
      %p406 = scmp.lt.s32.totalorder %s25, 3
      %p407 = pnand %p405, %p406
      %p408 = pneg %p407
      // Predicated region
      $region69: #{tpu_custom_call.1} parent=5 // pred_check
        _
      $region70: #{tpu_custom_call.1} parent=5 // pred_check_branch
        %410 = sbr.rel (%p407) target = $region72
      $region71: #{tpu_custom_call.1} parent=5 // pred_region
        %s411 = ssub.s32 %s25, 1
        %s412 = sand.u32 %s38, 1
        %s413 = scalar_lea.sflag [#allocation3], %s412
        %s414 = sand.u32 %s38, 1
        %s415 = smul.addr %s414, 48
        %s416 = scalar_lea.vmem [#allocation2], %s415
        // Predicated region
        $region73: #{tpu_custom_call.1} parent=71 // pred_check
          %p417 = pneg %p51
        $region74: #{tpu_custom_call.1} parent=71 // pred_check_branch
          %419 = sbr.rel (%p417) target = $region76
        $region75: #{tpu_custom_call.1} parent=71 // pred_region
          %420 = dma.done %s413, 768
        $region76: #{tpu_custom_call.1} parent=71 // pred_fallthru
          _
        %s421 = sand.u32 %s38, 1
        %s422 = scalar_lea.sflag [#allocation3], %s421
        %s423 = sand.u32 %s38, 1
        %s424 = smul.addr %s423, 48
        %s425 = scalar_lea.vmem [#allocation2], %s424
        %p426 = pneg %p51
        %p427 = pneg %p48
        %p428 = pneg %p72
        %p429 = pneg %p69
        %p430 = pneg %p93
        %p431 = pneg %p90
        %p432 = pneg %p114
        %p433 = pneg %p111
        %p434 = pneg %p135
        %p435 = pneg %p132
        %p436 = pneg %p156
        %p437 = pneg %p153
        %p438 = pneg %p177
        %p439 = pneg %p174
        %p440 = pneg %p198
        %p441 = pneg %p195
        %p442 = pneg %p219
        %p443 = pneg %p216
        %p444 = pneg %p240
        %p445 = pneg %p237
        %p446 = pneg %p261
        %p447 = pneg %p258
        %p448 = pneg %p282
        %p449 = pneg %p279
        %p450 = pneg %p303
        %p451 = pneg %p300
        %p452 = pneg %p329
        %p453 = pneg %p326
        %s454 = sand.u32 %s316, 1
        %s455 = scalar_lea.sflag [#allocation4], %s454
        %s456 = sand.u32 %s316, 1
        %s457 = smul.addr %s456, 48
        %s458 = scalar_lea.vmem [#allocation5], %s457
        %v459 = vld [vmem:[%s416] sm:$0xff]
        %v460 = vld [vmem:[%s416 + $0x8] sm:$0xff]
        %v461 = vld [vmem:[%s416 + $0x10] sm:$0xff]
        %v462 = vld [vmem:[%s416 + $0x18] sm:$0xff]
        %v463 = vld [vmem:[%s416 + $0x20] sm:$0xff]
        %v464 = vld [vmem:[%s416 + $0x28] sm:$0xff]
        %v465 = vld [vmem:[%s1] sm:$0xff]
        %v466 = vld [vmem:[%s1 + $0x8] sm:$0xff]
        %v467 = vld [vmem:[%s1 + $0x10] sm:$0xff]
        %v468 = vld [vmem:[%s2] sm:$0xff]
        %v469 = vld [vmem:[%s2 + $0x8] sm:$0xff]
        %v470 = vld [vmem:[%s2 + $0x10] sm:$0xff]
        %472 = vset.pattern.permute.xlu0 0
        %473 = vperm.xlu0 %472, %v468
        %v474 = vpop.permute.xlu0 %473
        %477 = vset.pattern.permute.xlu0 0
        %478 = vperm.xlu0 %477, %v469
        %v479 = vpop.permute.xlu0 %478
        %482 = vset.pattern.permute.xlu0 0
        %483 = vperm.xlu0 %482, %v470
        %v484 = vpop.permute.xlu0 %483
        %vm486 = vcmask 195584
        %v488 = vsel %vm486, %v465, 0
        %v491 = vsel %vm486, %v466, 0
        %v494 = vsel %vm486, %v467, 0
        %496 = vmatprep.subr.mxu0 %v460
        %497 = vmatpush1.msra.mxu0 %v459
        %498 = vmatprep.subr.mxu0 %v462
        %499 = vmatpush1.msra.mxu0 %v461
        %500 = vmatprep.subr.mxu0 %v464
        %501 = vmatpush1.msra.mxu0 %v463
        %502 = vmatprep.subr.mxu0 0.0
        %503 = vmatpush1.msra.mxu0 0.0
        %504 = vmatprep.subr.mxu0 0.0
        %505 = vmatpush1.msra.mxu0 0.0
        %506 = vmatprep.subr.mxu0 0.0
        %507 = vmatpush1.msra.mxu0 0.0
        %508 = vmatprep.subr.mxu0 0.0
        %509 = vmatpush1.msra.mxu0 0.0
        %510 = vmatprep.subr.mxu0 0.0
        %511 = vmatpush1.msra.mxu0 0.0
        %512 = vmatprep.subr.mxu0 0.0
        %513 = vmatpush1.msra.mxu0 0.0
        %514 = vmatprep.subr.mxu0 0.0
        %515 = vmatpush1.msra.mxu0 0.0
        %516 = vmatprep.subr.mxu0 0.0
        %517 = vmatpush1.msra.mxu0 0.0
        %518 = vmatprep.subr.mxu0 0.0
        %519 = vmatpush1.msra.mxu0 0.0
        %520 = vmatprep.subr.mxu0 0.0
        %521 = vmatpush1.msra.mxu0 0.0
        %522 = vmatprep.subr.mxu0 0.0
        %523 = vmatpush1.msra.mxu0 0.0
        %524 = vmatprep.subr.mxu0 0.0
        %525 = vmatpush1.msra.mxu0 0.0
        %526 = vmatprep.subr.mxu0 0.0
        %527 = vmatpush1.msra.mxu0 0.0
        %528 = vmatprep.subr.mxu0 0.0
        %529 = vmatpush1.msra.mxu0 0.0
        %530 = vmatprep.subr.mxu0 0.0
        %531 = vmatpush1.msra.mxu0 0.0
        %532 = vmatprep.subr.mxu0 0.0
        %533 = vmatpush1.msra.mxu0 0.0
        %534 = vmatprep.subr.mxu0 0.0
        %535 = vmatpush1.msra.mxu0 0.0
        %536 = vmatprep.subr.mxu0 0.0
        %537 = vmatpush1.msra.mxu0 0.0
        %538 = vmatprep.subr.mxu0 0.0
        %539 = vmatpush1.msra.mxu0 0.0
        %540 = vmatprep.subr.mxu0 0.0
        %541 = vmatpush1.msra.mxu0 0.0
        %542 = vmatprep.subr.mxu0 0.0
        %543 = vmatpush1.msra.mxu0 0.0
        %544 = vmatprep.subr.mxu0 0.0
        %545 = vmatpush1.msra.mxu0 0.0
        %546 = vmatprep.subr.mxu0 0.0
        %547 = vmatpush1.msra.mxu0 0.0
        %548 = vmatprep.subr.mxu0 0.0
        %549 = vmatpush1.msra.mxu0 0.0
        %550 = vmatprep.subr.mxu0 0.0
        %551 = vmatpush1.msra.mxu0 0.0
        %552 = vmatprep.subr.mxu0 0.0
        %553 = vmatpush1.msra.mxu0 0.0
        %554 = vmatprep.subr.mxu0 0.0
        %555 = vmatpush1.msra.mxu0 0.0
        %556 = vmatprep.subr.mxu0 0.0
        %557 = vmatpush1.msra.mxu0 0.0
        %558 = vmatprep.subr.mxu0 0.0
        %559 = vmatpush1.msra.mxu0 0.0
        %560 = vmatprep.mubr.f32.mxu0 0.0
        %561 = vmatmul.mubr.f32.gmra.mrb[0].mxu0 %v488
        %v562 = vpop.f32.mrb[0].mxu0
        %v563 = vadd.f32 %v474, %v562
        %v564 = vpop.f32.mrb[0].mxu0
        %v565 = vadd.f32 %v474, %v564
        %566 = vmatprep.mubr.f32.mxu0 0.0
        %567 = vmatmul.mubr.f32.gmra.mrb[0].mxu0 %v491
        %v568 = vpop.f32.mrb[0].mxu0
        %v569 = vadd.f32 %v479, %v568
        %v570 = vpop.f32.mrb[0].mxu0
        %v571 = vadd.f32 %v479, %v570
        %572 = vmatprep.mubr.f32.mxu0 0.0
        %573 = vmatmul.mubr.f32.gmra.mrb[0].mxu0 %v494
        %v574 = vpop.f32.mrb[0].mxu0
        %v575 = vadd.f32 %v484, %v574
        %v576 = vpop.f32.mrb[0].mxu0
        %v577 = vadd.f32 %v484, %v576
        %578 = vdwg.mxu0
        %v579 = vmax.f32 %v563, 0.0
        %v580 = vmax.f32 %v565, 0.0
        %v581 = vmax.f32 %v569, 0.0
        %v582 = vmax.f32 %v571, 0.0
        %v583 = vmax.f32 %v575, 0.0
        %v584 = vmax.f32 %v577, 0.0
        %591 = vrot.lane.b32.xlu0 %v579, 64
        %v592 = vpop.permute.xlu0 %591
        %593 = vrot.lane.b32.xlu0 %v580, 64
        %v594 = vpop.permute.xlu0 %593
        %595 = vrot.lane.b32.xlu0 %v581, 64
        %v596 = vpop.permute.xlu0 %595
        %597 = vrot.lane.b32.xlu0 %v582, 64
        %v598 = vpop.permute.xlu0 %597
        %599 = vrot.lane.b32.xlu0 %v583, 64
        %v600 = vpop.permute.xlu0 %599
        %601 = vrot.lane.b32.xlu0 %v584, 64
        %v602 = vpop.permute.xlu0 %601
        %vm603 = vcmask 523264
        %v604 = vsel %vm603, %v592, %v594
        %v605 = vsel %vm603, %v596, %v598
        %v606 = vsel %vm603, %v600, %v602
        %v616 = vsel %vm603, 0.0, %v592
        %v617 = vsel %vm603, 0.0, %v596
        %v618 = vsel %vm603, 0.0, %v600
        %v619 = vsel %vm603, %v594, 0.0
        %v620 = vsel %vm603, %v598, 0.0
        %v621 = vsel %vm603, %v602, 0.0
        %v624 = vrot.slane %v616, 4
        %v625 = vrot.slane %v604, 4
        %v626 = vrot.slane %v619, 4
        %627 = vrot.lane.b32.xlu0 %v624, 112
        %v628 = vpop.permute.xlu0 %627
        %629 = vrot.lane.b32.xlu0 %v625, 112
        %v630 = vpop.permute.xlu0 %629
        %631 = vrot.lane.b32.xlu0 %v626, 112
        %v632 = vpop.permute.xlu0 %631
        %vm633 = vcmask 916480
        %v634 = vsel %vm633, %v628, %v630
        %v635 = vsel %vm633, %v630, %v632
        %639 = vrot.lane.b32.xlu0 %v616, 96
        %v640 = vpop.permute.xlu0 %639
        %641 = vrot.lane.b32.xlu0 %v604, 96
        %v642 = vpop.permute.xlu0 %641
        %643 = vrot.lane.b32.xlu0 %v619, 96
        %v644 = vpop.permute.xlu0 %643
        %vm645 = vcmask 785408
        %v646 = vsel %vm645, %v640, %v642
        %v647 = vsel %vm645, %v642, %v644
        %vm648 = vcmask 1043456
        %v649 = vsel %vm648, %v616, %v634
        %v650 = vsel %vm648, %v604, %v635
        %v651 = vsel %vm648, %v619, %v632
        %v652 = vld [vmem:[%s3] sm:$0xf]
        %v653 = vld [vmem:[%s7] sm:$0xf]
        %655 = vset.pattern.permute.xlu0 0
        %656 = vperm.xlu0 %655, %v653
        %v657 = vpop.permute.xlu0 %656
        %662 = vrot.lane.b32.xlu0 %v649, 80
        %v663 = vpop.permute.xlu0 %662
        %664 = vrot.lane.b32.xlu0 %v650, 80
        %v665 = vpop.permute.xlu0 %664
        %666 = vrot.lane.b32.xlu0 %v651, 80
        %v667 = vpop.permute.xlu0 %666
        %668 = vrot.lane.b32.xlu0 %v646, 80
        %v669 = vpop.permute.xlu0 %668
        %670 = vrot.lane.b32.xlu0 %v647, 80
        %v671 = vpop.permute.xlu0 %670
        %672 = vrot.lane.b32.xlu0 %v644, 80
        %v673 = vpop.permute.xlu0 %672
        %vm674 = vcmask 654336
        %v675 = vsel %vm674, %v663, %v665
        %v676 = vsel %vm674, %v665, %v667
        %v677 = vsel %vm674, %v669, %v671
        %v678 = vsel %vm674, %v671, %v673
        %vm681 = vcmask 97280
        %v683 = vsel %vm681, %v652, 0
        %v685 = vsel %vm648, %v677, 0
        %v687 = vsel %vm648, %v678, 0
        %689 = vmatprep.subr.mxu0 %v676
        %690 = vmatpush1.msra.mxu0 %v675
        %691 = vmatprep.subr.mxu0 %v687
        %692 = vmatpush1.msra.mxu0 %v685
        %693 = vmatprep.subr.mxu0 0.0
        %694 = vmatpush1.msra.mxu0 0.0
        %695 = vmatprep.subr.mxu0 0.0
        %696 = vmatpush1.msra.mxu0 0.0
        %697 = vmatprep.subr.mxu0 0.0
        %698 = vmatpush1.msra.mxu0 0.0
        %699 = vmatprep.subr.mxu0 0.0
        %700 = vmatpush1.msra.mxu0 0.0
        %701 = vmatprep.subr.mxu0 0.0
        %702 = vmatpush1.msra.mxu0 0.0
        %703 = vmatprep.subr.mxu0 0.0
        %704 = vmatpush1.msra.mxu0 0.0
        %705 = vmatprep.subr.mxu0 0.0
        %706 = vmatpush1.msra.mxu0 0.0
        %707 = vmatprep.subr.mxu0 0.0
        %708 = vmatpush1.msra.mxu0 0.0
        %709 = vmatprep.subr.mxu0 0.0
        %710 = vmatpush1.msra.mxu0 0.0
        %711 = vmatprep.subr.mxu0 0.0
        %712 = vmatpush1.msra.mxu0 0.0
        %713 = vmatprep.subr.mxu0 0.0
        %714 = vmatpush1.msra.mxu0 0.0
        %715 = vmatprep.subr.mxu0 0.0
        %716 = vmatpush1.msra.mxu0 0.0
        %717 = vmatprep.subr.mxu0 0.0
        %718 = vmatpush1.msra.mxu0 0.0
        %719 = vmatprep.subr.mxu0 0.0
        %720 = vmatpush1.msra.mxu0 0.0
        %721 = vmatprep.subr.mxu0 0.0
        %722 = vmatpush1.msra.mxu0 0.0
        %723 = vmatprep.subr.mxu0 0.0
        %724 = vmatpush1.msra.mxu0 0.0
        %725 = vmatprep.subr.mxu0 0.0
        %726 = vmatpush1.msra.mxu0 0.0
        %727 = vmatprep.subr.mxu0 0.0
        %728 = vmatpush1.msra.mxu0 0.0
        %729 = vmatprep.subr.mxu0 0.0
        %730 = vmatpush1.msra.mxu0 0.0
        %731 = vmatprep.subr.mxu0 0.0
        %732 = vmatpush1.msra.mxu0 0.0
        %733 = vmatprep.subr.mxu0 0.0
        %734 = vmatpush1.msra.mxu0 0.0
        %735 = vmatprep.subr.mxu0 0.0
        %736 = vmatpush1.msra.mxu0 0.0
        %737 = vmatprep.subr.mxu0 0.0
        %738 = vmatpush1.msra.mxu0 0.0
        %739 = vmatprep.subr.mxu0 0.0
        %740 = vmatpush1.msra.mxu0 0.0
        %741 = vmatprep.subr.mxu0 0.0
        %742 = vmatpush1.msra.mxu0 0.0
        %743 = vmatprep.subr.mxu0 0.0
        %744 = vmatpush1.msra.mxu0 0.0
        %745 = vmatprep.subr.mxu0 0.0
        %746 = vmatpush1.msra.mxu0 0.0
        %747 = vmatprep.subr.mxu0 0.0
        %748 = vmatpush1.msra.mxu0 0.0
        %749 = vmatprep.subr.mxu0 0.0
        %750 = vmatpush1.msra.mxu0 0.0
        %751 = vmatprep.subr.mxu0 0.0
        %752 = vmatpush1.msra.mxu0 0.0
        %753 = vmatprep.mubr.f32.mxu0 0.0
        %754 = vmatmul.mubr.f32.gmra.mrb[0].mxu0 %v683
        %v755 = vpop.f32.mrb[0].mxu0
        %v756 = vadd.f32 %v657, %v755
        %v757 = vpop.f32.mrb[0].mxu0
        %v758 = vadd.f32 %v657, %v757
        %759 = vdwg.mxu0
        %766 = vrot.lane.b32.xlu0 %v624, 64
        %v767 = vpop.permute.xlu0 %766
        %768 = vrot.lane.b32.xlu0 %v625, 64
        %v769 = vpop.permute.xlu0 %768
        %770 = vrot.lane.b32.xlu0 %v626, 64
        %v771 = vpop.permute.xlu0 %770
        %v772 = vsel %vm603, %v767, %v769
        %v773 = vsel %vm603, %v769, %v771
        %v774 = vsel %vm648, %v624, %v646
        %v775 = vsel %vm648, %v625, %v647
        %v776 = vsel %vm648, %v626, %v644
        %v777 = vld [vmem:[%s4] sm:$0xf]
        %v778 = vld [vmem:[%s8] sm:$0xf]
        %780 = vset.pattern.permute.xlu0 0
        %781 = vperm.xlu0 %780, %v778
        %v782 = vpop.permute.xlu0 %781
        %787 = vrot.lane.b32.xlu0 %v774, 96
        %v788 = vpop.permute.xlu0 %787
        %789 = vrot.lane.b32.xlu0 %v775, 96
        %v790 = vpop.permute.xlu0 %789
        %791 = vrot.lane.b32.xlu0 %v776, 96
        %v792 = vpop.permute.xlu0 %791
        %793 = vrot.lane.b32.xlu0 %v772, 96
        %v794 = vpop.permute.xlu0 %793
        %795 = vrot.lane.b32.xlu0 %v773, 96
        %v796 = vpop.permute.xlu0 %795
        %797 = vrot.lane.b32.xlu0 %v771, 96
        %v798 = vpop.permute.xlu0 %797
        %v799 = vsel %vm645, %v788, %v790
        %v800 = vsel %vm645, %v790, %v792
        %v801 = vsel %vm645, %v794, %v796
        %v802 = vsel %vm645, %v796, %v798
        %v806 = vsel %vm681, %v777, 0
        %v808 = vsel %vm648, %v801, 0
        %v810 = vsel %vm648, %v802, 0
        %812 = vmatprep.subr.mxu0 %v800
        %813 = vmatpush1.msra.mxu0 %v799
        %814 = vmatprep.subr.mxu0 %v810
        %815 = vmatpush1.msra.mxu0 %v808
        %816 = vmatprep.subr.mxu0 0.0
        %817 = vmatpush1.msra.mxu0 0.0
        %818 = vmatprep.subr.mxu0 0.0
        %819 = vmatpush1.msra.mxu0 0.0
        %820 = vmatprep.subr.mxu0 0.0
        %821 = vmatpush1.msra.mxu0 0.0
        %822 = vmatprep.subr.mxu0 0.0
        %823 = vmatpush1.msra.mxu0 0.0
        %824 = vmatprep.subr.mxu0 0.0
        %825 = vmatpush1.msra.mxu0 0.0
        %826 = vmatprep.subr.mxu0 0.0
        %827 = vmatpush1.msra.mxu0 0.0
        %828 = vmatprep.subr.mxu0 0.0
        %829 = vmatpush1.msra.mxu0 0.0
        %830 = vmatprep.subr.mxu0 0.0
        %831 = vmatpush1.msra.mxu0 0.0
        %832 = vmatprep.subr.mxu0 0.0
        %833 = vmatpush1.msra.mxu0 0.0
        %834 = vmatprep.subr.mxu0 0.0
        %835 = vmatpush1.msra.mxu0 0.0
        %836 = vmatprep.subr.mxu0 0.0
        %837 = vmatpush1.msra.mxu0 0.0
        %838 = vmatprep.subr.mxu0 0.0
        %839 = vmatpush1.msra.mxu0 0.0
        %840 = vmatprep.subr.mxu0 0.0
        %841 = vmatpush1.msra.mxu0 0.0
        %842 = vmatprep.subr.mxu0 0.0
        %843 = vmatpush1.msra.mxu0 0.0
        %844 = vmatprep.subr.mxu0 0.0
        %845 = vmatpush1.msra.mxu0 0.0
        %846 = vmatprep.subr.mxu0 0.0
        %847 = vmatpush1.msra.mxu0 0.0
        %848 = vmatprep.subr.mxu0 0.0
        %849 = vmatpush1.msra.mxu0 0.0
        %850 = vmatprep.subr.mxu0 0.0
        %851 = vmatpush1.msra.mxu0 0.0
        %852 = vmatprep.subr.mxu0 0.0
        %853 = vmatpush1.msra.mxu0 0.0
        %854 = vmatprep.subr.mxu0 0.0
        %855 = vmatpush1.msra.mxu0 0.0
        %856 = vmatprep.subr.mxu0 0.0
        %857 = vmatpush1.msra.mxu0 0.0
        %858 = vmatprep.subr.mxu0 0.0
        %859 = vmatpush1.msra.mxu0 0.0
        %860 = vmatprep.subr.mxu0 0.0
        %861 = vmatpush1.msra.mxu0 0.0
        %862 = vmatprep.subr.mxu0 0.0
        %863 = vmatpush1.msra.mxu0 0.0
        %864 = vmatprep.subr.mxu0 0.0
        %865 = vmatpush1.msra.mxu0 0.0
        %866 = vmatprep.subr.mxu0 0.0
        %867 = vmatpush1.msra.mxu0 0.0
        %868 = vmatprep.subr.mxu0 0.0
        %869 = vmatpush1.msra.mxu0 0.0
        %870 = vmatprep.subr.mxu0 0.0
        %871 = vmatpush1.msra.mxu0 0.0
        %872 = vmatprep.subr.mxu0 0.0
        %873 = vmatpush1.msra.mxu0 0.0
        %874 = vmatprep.subr.mxu0 0.0
        %875 = vmatpush1.msra.mxu0 0.0
        %876 = vmatprep.mubr.f32.mxu0 0.0
        %877 = vmatmul.mubr.f32.gmra.mrb[0].mxu0 %v806
        %v878 = vpop.f32.mrb[0].mxu0
        %v879 = vadd.f32 %v782, %v878
        %v880 = vpop.f32.mrb[0].mxu0
        %v881 = vadd.f32 %v782, %v880
        %882 = vdwg.mxu0
        %v885 = vrot.slane %v617, 4
        %v886 = vrot.slane %v605, 4
        %v887 = vrot.slane %v620, 4
        %888 = vrot.lane.b32.xlu0 %v885, 80
        %v889 = vpop.permute.xlu0 %888
        %890 = vrot.lane.b32.xlu0 %v886, 80
        %v891 = vpop.permute.xlu0 %890
        %892 = vrot.lane.b32.xlu0 %v887, 80
        %v893 = vpop.permute.xlu0 %892
        %v894 = vsel %vm674, %v889, %v891
        %v895 = vsel %vm674, %v891, %v893
        %899 = vrot.lane.b32.xlu0 %v617, 32
        %v900 = vpop.permute.xlu0 %899
        %901 = vrot.lane.b32.xlu0 %v605, 32
        %v902 = vpop.permute.xlu0 %901
        %903 = vrot.lane.b32.xlu0 %v620, 32
        %v904 = vpop.permute.xlu0 %903
        %vm905 = vcmask 261120
        %v906 = vsel %vm905, %v900, %v902
        %v907 = vsel %vm905, %v902, %v904
        %v908 = vsel %vm648, %v617, %v894
        %v909 = vsel %vm648, %v605, %v895
        %v910 = vsel %vm648, %v620, %v893
        %v911 = vld [vmem:[%s5] sm:$0xf]
        %v912 = vld [vmem:[%s9] sm:$0xf]
        %914 = vset.pattern.permute.xlu0 0
        %915 = vperm.xlu0 %914, %v912
        %v916 = vpop.permute.xlu0 %915
        %921 = vrot.lane.b32.xlu0 %v908, 112
        %v922 = vpop.permute.xlu0 %921
        %923 = vrot.lane.b32.xlu0 %v909, 112
        %v924 = vpop.permute.xlu0 %923
        %925 = vrot.lane.b32.xlu0 %v910, 112
        %v926 = vpop.permute.xlu0 %925
        %927 = vrot.lane.b32.xlu0 %v906, 112
        %v928 = vpop.permute.xlu0 %927
        %929 = vrot.lane.b32.xlu0 %v907, 112
        %v930 = vpop.permute.xlu0 %929
        %931 = vrot.lane.b32.xlu0 %v904, 112
        %v932 = vpop.permute.xlu0 %931
        %v933 = vsel %vm633, %v922, %v924
        %v934 = vsel %vm633, %v924, %v926
        %v935 = vsel %vm633, %v928, %v930
        %v936 = vsel %vm633, %v930, %v932
        %v940 = vsel %vm681, %v911, 0
        %v942 = vsel %vm648, %v935, 0
        %v944 = vsel %vm648, %v936, 0
        %946 = vmatprep.subr.mxu0 %v934
        %947 = vmatpush1.msra.mxu0 %v933
        %948 = vmatprep.subr.mxu0 %v944
        %949 = vmatpush1.msra.mxu0 %v942
        %950 = vmatprep.subr.mxu0 0.0
        %951 = vmatpush1.msra.mxu0 0.0
        %952 = vmatprep.subr.mxu0 0.0
        %953 = vmatpush1.msra.mxu0 0.0
        %954 = vmatprep.subr.mxu0 0.0
        %955 = vmatpush1.msra.mxu0 0.0
        %956 = vmatprep.subr.mxu0 0.0
        %957 = vmatpush1.msra.mxu0 0.0
        %958 = vmatprep.subr.mxu0 0.0
        %959 = vmatpush1.msra.mxu0 0.0
        %960 = vmatprep.subr.mxu0 0.0
        %961 = vmatpush1.msra.mxu0 0.0
        %962 = vmatprep.subr.mxu0 0.0
        %963 = vmatpush1.msra.mxu0 0.0
        %964 = vmatprep.subr.mxu0 0.0
        %965 = vmatpush1.msra.mxu0 0.0
        %966 = vmatprep.subr.mxu0 0.0
        %967 = vmatpush1.msra.mxu0 0.0
        %968 = vmatprep.subr.mxu0 0.0
        %969 = vmatpush1.msra.mxu0 0.0
        %970 = vmatprep.subr.mxu0 0.0
        %971 = vmatpush1.msra.mxu0 0.0
        %972 = vmatprep.subr.mxu0 0.0
        %973 = vmatpush1.msra.mxu0 0.0
        %974 = vmatprep.subr.mxu0 0.0
        %975 = vmatpush1.msra.mxu0 0.0
        %976 = vmatprep.subr.mxu0 0.0
        %977 = vmatpush1.msra.mxu0 0.0
        %978 = vmatprep.subr.mxu0 0.0
        %979 = vmatpush1.msra.mxu0 0.0
        %980 = vmatprep.subr.mxu0 0.0
        %981 = vmatpush1.msra.mxu0 0.0
        %982 = vmatprep.subr.mxu0 0.0
        %983 = vmatpush1.msra.mxu0 0.0
        %984 = vmatprep.subr.mxu0 0.0
        %985 = vmatpush1.msra.mxu0 0.0
        %986 = vmatprep.subr.mxu0 0.0
        %987 = vmatpush1.msra.mxu0 0.0
        %988 = vmatprep.subr.mxu0 0.0
        %989 = vmatpush1.msra.mxu0 0.0
        %990 = vmatprep.subr.mxu0 0.0
        %991 = vmatpush1.msra.mxu0 0.0
        %992 = vmatprep.subr.mxu0 0.0
        %993 = vmatpush1.msra.mxu0 0.0
        %994 = vmatprep.subr.mxu0 0.0
        %995 = vmatpush1.msra.mxu0 0.0
        %996 = vmatprep.subr.mxu0 0.0
        %997 = vmatpush1.msra.mxu0 0.0
        %998 = vmatprep.subr.mxu0 0.0
        %999 = vmatpush1.msra.mxu0 0.0
        %1000 = vmatprep.subr.mxu0 0.0
        %1001 = vmatpush1.msra.mxu0 0.0
        %1002 = vmatprep.subr.mxu0 0.0
        %1003 = vmatpush1.msra.mxu0 0.0
        %1004 = vmatprep.subr.mxu0 0.0
        %1005 = vmatpush1.msra.mxu0 0.0
        %1006 = vmatprep.subr.mxu0 0.0
        %1007 = vmatpush1.msra.mxu0 0.0
        %1008 = vmatprep.subr.mxu0 0.0
        %1009 = vmatpush1.msra.mxu0 0.0
        %1010 = vmatprep.mubr.f32.mxu0 0.0
        %1011 = vmatmul.mubr.f32.gmra.mrb[0].mxu0 %v940
        %v1012 = vpop.f32.mrb[0].mxu0
        %v1013 = vadd.f32 %v916, %v1012
        %v1014 = vpop.f32.mrb[0].mxu0
        %v1015 = vadd.f32 %v916, %v1014
        %1016 = vdwg.mxu0
        %1019 = vrot.lane.b32.xlu0 %v617, 64
        %v1020 = vpop.permute.xlu0 %1019
        %1021 = vrot.lane.b32.xlu0 %v605, 64
        %v1022 = vpop.permute.xlu0 %1021
        %1023 = vrot.lane.b32.xlu0 %v620, 64
        %v1024 = vpop.permute.xlu0 %1023
        %v1025 = vsel %vm603, %v1020, %v1022
        %v1026 = vsel %vm603, %v1022, %v1024
        %v1029 = vsel %vm648, %v885, %v1025
        %v1030 = vsel %vm648, %v886, %v1026
        %v1031 = vld [vmem:[%s6] sm:$0xf]
        %v1032 = vld [vmem:[%s10] sm:$0xf]
        %1034 = vset.pattern.permute.xlu0 0
        %1035 = vperm.xlu0 %1034, %v1032
        %v1036 = vpop.permute.xlu0 %1035
        %v1039 = vsel %vm681, %v1031, 0
        %v1041 = vsel %vm648, %v886, 0
        %v1043 = vsel %vm648, %v887, 0
        %1045 = vmatprep.subr.mxu0 %v1030
        %1046 = vmatpush1.msra.mxu0 %v1029
        %1047 = vmatprep.subr.mxu0 %v1043
        %1048 = vmatpush1.msra.mxu0 %v1041
        %1049 = vmatprep.subr.mxu0 0.0
        %1050 = vmatpush1.msra.mxu0 0.0
        %1051 = vmatprep.subr.mxu0 0.0
        %1052 = vmatpush1.msra.mxu0 0.0
        %1053 = vmatprep.subr.mxu0 0.0
        %1054 = vmatpush1.msra.mxu0 0.0
        %1055 = vmatprep.subr.mxu0 0.0
        %1056 = vmatpush1.msra.mxu0 0.0
        %1057 = vmatprep.subr.mxu0 0.0
        %1058 = vmatpush1.msra.mxu0 0.0
        %1059 = vmatprep.subr.mxu0 0.0
        %1060 = vmatpush1.msra.mxu0 0.0
        %1061 = vmatprep.subr.mxu0 0.0
        %1062 = vmatpush1.msra.mxu0 0.0
        %1063 = vmatprep.subr.mxu0 0.0
        %1064 = vmatpush1.msra.mxu0 0.0
        %1065 = vmatprep.subr.mxu0 0.0
        %1066 = vmatpush1.msra.mxu0 0.0
        %1067 = vmatprep.subr.mxu0 0.0
        %1068 = vmatpush1.msra.mxu0 0.0
        %1069 = vmatprep.subr.mxu0 0.0
        %1070 = vmatpush1.msra.mxu0 0.0
        %1071 = vmatprep.subr.mxu0 0.0
        %1072 = vmatpush1.msra.mxu0 0.0
        %1073 = vmatprep.subr.mxu0 0.0
        %1074 = vmatpush1.msra.mxu0 0.0
        %1075 = vmatprep.subr.mxu0 0.0
        %1076 = vmatpush1.msra.mxu0 0.0
        %1077 = vmatprep.subr.mxu0 0.0
        %1078 = vmatpush1.msra.mxu0 0.0
        %1079 = vmatprep.subr.mxu0 0.0
        %1080 = vmatpush1.msra.mxu0 0.0
        %1081 = vmatprep.subr.mxu0 0.0
        %1082 = vmatpush1.msra.mxu0 0.0
        %1083 = vmatprep.subr.mxu0 0.0
        %1084 = vmatpush1.msra.mxu0 0.0
        %1085 = vmatprep.subr.mxu0 0.0
        %1086 = vmatpush1.msra.mxu0 0.0
        %1087 = vmatprep.subr.mxu0 0.0
        %1088 = vmatpush1.msra.mxu0 0.0
        %1089 = vmatprep.subr.mxu0 0.0
        %1090 = vmatpush1.msra.mxu0 0.0
        %1091 = vmatprep.subr.mxu0 0.0
        %1092 = vmatpush1.msra.mxu0 0.0
        %1093 = vmatprep.subr.mxu0 0.0
        %1094 = vmatpush1.msra.mxu0 0.0
        %1095 = vmatprep.subr.mxu0 0.0
        %1096 = vmatpush1.msra.mxu0 0.0
        %1097 = vmatprep.subr.mxu0 0.0
        %1098 = vmatpush1.msra.mxu0 0.0
        %1099 = vmatprep.subr.mxu0 0.0
        %1100 = vmatpush1.msra.mxu0 0.0
        %1101 = vmatprep.subr.mxu0 0.0
        %1102 = vmatpush1.msra.mxu0 0.0
        %1103 = vmatprep.subr.mxu0 0.0
        %1104 = vmatpush1.msra.mxu0 0.0
        %1105 = vmatprep.subr.mxu0 0.0
        %1106 = vmatpush1.msra.mxu0 0.0
        %1107 = vmatprep.subr.mxu0 0.0
        %1108 = vmatpush1.msra.mxu0 0.0
        %1109 = vmatprep.mubr.f32.mxu0 0.0
        %1110 = vmatmul.mubr.f32.gmra.mrb[0].mxu0 %v1039
        %v1111 = vpop.f32.mrb[0].mxu0
        %v1112 = vadd.f32 %v1036, %v1111
        %v1113 = vpop.f32.mrb[0].mxu0
        %v1114 = vadd.f32 %v1036, %v1113
        %1115 = vdwg.mxu0
        %1118 = vrot.lane.b32.xlu0 %v618, 112
        %v1119 = vpop.permute.xlu0 %1118
        %1120 = vrot.lane.b32.xlu0 %v606, 112
        %v1121 = vpop.permute.xlu0 %1120
        %1122 = vrot.lane.b32.xlu0 %v621, 112
        %v1123 = vpop.permute.xlu0 %1122
        %v1124 = vsel %vm633, %v1119, %v1121
        %v1125 = vsel %vm633, %v1121, %v1123
        %v1129 = vmax.f32 %v618, %v1124
        %v1130 = vmax.f32 %v606, %v1125
        %v1131 = vmax.f32 %v621, %v1123
        %1132 = vrot.lane.b32.xlu0 %v618, 96
        %v1133 = vpop.permute.xlu0 %1132
        %1134 = vrot.lane.b32.xlu0 %v606, 96
        %v1135 = vpop.permute.xlu0 %1134
        %1136 = vrot.lane.b32.xlu0 %v621, 96
        %v1137 = vpop.permute.xlu0 %1136
        %v1138 = vsel %vm645, %v1133, %v1135
        %v1139 = vsel %vm645, %v1135, %v1137
        %v1143 = vmax.f32 %v1129, %v1138
        %v1144 = vmax.f32 %v1130, %v1139
        %v1145 = vmax.f32 %v1131, %v1137
        %v1146 = vld [vmem:[%s11] sm:$0xf]
        %1148 = vset.pattern.permute.xlu0 0
        %1149 = vperm.xlu0 %1148, %v1146
        %v1150 = vpop.permute.xlu0 %1149
        %v1152 = vmul.f32 %v1143, %v1150
        %v1153 = vmul.f32 %v1144, %v1150
        %v1154 = vmul.f32 %v1145, %v1150
        %v1155 = vld [vmem:[%s12] sm:$0xf]
        %1157 = vset.pattern.permute.xlu0 0
        %1158 = vperm.xlu0 %1157, %v1155
        %v1159 = vpop.permute.xlu0 %1158
        %v1161 = vadd.f32 %v1152, %v1159
        %v1162 = vadd.f32 %v1153, %v1159
        %v1163 = vadd.f32 %v1154, %v1159
        %v1166 = vrot.slane %v879, 4
        %v1167 = vrot.slane %v881, 4
        %v1172 = vrot.slane %v1112, 4
        %v1173 = vrot.slane %v1114, 4
        %1179 = vrot.lane.b32.xlu0 %v1161, 80
        %v1180 = vpop.permute.xlu0 %1179
        %1181 = vrot.lane.b32.xlu0 %v1162, 80
        %v1182 = vpop.permute.xlu0 %1181
        %1183 = vrot.lane.b32.xlu0 %v1163, 80
        %v1184 = vpop.permute.xlu0 %1183
        %v1185 = vsel %vm674, %v1180, %v1182
        %v1186 = vsel %vm674, %v1182, %v1184
        %v1189 = vsel %vm648, %v756, %v1166
        %v1190 = vsel %vm648, %v758, %v1167
        %v1191 = vsel %vm648, %v1013, %v1172
        %v1192 = vsel %vm648, %v1015, %v1173
        %v1193 = vsel %vm648, %v1185, %v575
        %v1194 = vsel %vm648, %v1186, %v577
        %v1195 = vadd.f32 %v1189, %v459
        %v1196 = vadd.f32 %v1190, %v460
        %v1197 = vadd.f32 %v1191, %v461
        %v1198 = vadd.f32 %v1192, %v462
        %v1199 = vadd.f32 %v1193, %v463
        %v1200 = vadd.f32 %v1194, %v464
        %1201 = vst [vmem:[%s458] sm:$0xff] %v1195
        %1202 = vst [vmem:[%s458 + $0x8] sm:$0xff] %v1196
        %1203 = vst [vmem:[%s458 + $0x10] sm:$0xff] %v1197
        %1204 = vst [vmem:[%s458 + $0x18] sm:$0xff] %v1198
        %1205 = vst [vmem:[%s458 + $0x20] sm:$0xff] %v1199
        %1206 = vst [vmem:[%s458 + $0x28] sm:$0xff] %v1200
        %s1207 = sand.u32 %s316, 1
        %s1208 = scalar_lea.sflag [#allocation4], %s1207
        %s1209 = sand.u32 %s316, 1
        %s1210 = smul.addr %s1209, 48
        %s1211 = scalar_lea.vmem [#allocation5], %s1210
        // Predicated region
        $region77: #{tpu_custom_call.1} parent=71 // pred_check
          %p1212 = pneg %p326
        $region78: #{tpu_custom_call.1} parent=71 // pred_check_branch
          %1214 = sbr.rel (%p1212) target = $region80
        $region79: #{tpu_custom_call.1} parent=71 // pred_region
          %s1216 = ssub.s32 768, 768
          %1217 = vsyncadd %s1208, %s1216
          %s1218 = smul.addr %s30, 6
          %s1219 = smul.addr %s1218, 128
          %s1220 = scalar_lea.hbm %s13, %s1219
          %s1221 = sshll.u32 %s1211, 4
          %s1222 = int_to_ptr.vmem [resolvable:$true] %s1221
          %1227 = dma.vmem_to_hbm [thread:$0]  %s1222, 768, %s1220, %s1208, 256, 256, 16
        $region80: #{tpu_custom_call.1} parent=71 // pred_fallthru
          _
      $region72: #{tpu_custom_call.1} parent=5 // pred_fallthru
        _
      %p1228 = scmp.le.s32.totalorder 2, %s25
      // Predicated region
      $region81: #{tpu_custom_call.1} parent=5 // pred_check
        %p1229 = pneg %p1228
      $region82: #{tpu_custom_call.1} parent=5 // pred_check_branch
        %1231 = sbr.rel (%p1229) target = $region84
      $region83: #{tpu_custom_call.1} parent=5 // pred_region
        %s1232 = ssub.s32 %s25, 2
        // Predicated region
        $region85: #{tpu_custom_call.1} parent=83 // pred_check
          %p1233 = pneg %p332
        $region86: #{tpu_custom_call.1} parent=83 // pred_check_branch
          %1235 = sbr.rel (%p1233) target = $region88
        $region87: #{tpu_custom_call.1} parent=83 // pred_region
          %s1236 = sand.u32 %s317, 1
          %s1237 = scalar_lea.sflag [#allocation4], %s1236
          %s1238 = sand.u32 %s317, 1
          %s1239 = smul.addr %s1238, 48
          %s1240 = scalar_lea.vmem [#allocation5], %s1239
          %1241 = dma.done %s1237, 768
        $region88: #{tpu_custom_call.1} parent=83 // pred_fallthru
          _
      $region84: #{tpu_custom_call.1} parent=5 // pred_fallthru
        _
    $region6: #{tpu_custom_call.1} parent=1 // loop_footer
      %s29 = sadd.s32 1, %s25
    $region7: #{tpu_custom_call.1} parent=1 // loop_footer_branch
      %24 = sbr.rel target = $region3
    $region8: #{tpu_custom_call.1} parent=1 // loop_exit
      _
    %1242 = vsyncpa [#allocation3], 1
    %s1243 = scalar_lea.sflag [#allocation3], 1
    %1244 = vsyncpa %s1243, 1
    %1245 = vsyncpa [#allocation4], 1
    %s1246 = scalar_lea.sflag [#allocation4], 1
    %1247 = vsyncpa %s1246, 1

</llo_original>
